<compile_context>
chip_gen: v6e
topology: v6e:2x2x1
jax: 0.10.0
libtpu: 0.0.40
codegen_flags: <defaults>
</compile_context>

<pallas_src>
import functools

import jax
import jax.numpy as jnp
from jax.experimental import pallas as pl
from jax.experimental.pallas import tpu as pltpu

H = 512          # fixed by loss.reshape(512, 512) in the reference module
W = 512
C = 3            # rgb channels
TRESH = 0.2
TILE_ROWS = 128  # rows per grid step (multiple of 8; 4 tiles over 512 rows)
_BIG = 1e30      # exp(-_BIG) == 0.0 in f32 -> boundary mask for gx/gy padding


def _huber_l1_scalar_kernel(d_ref, pred_ref, gt_ref, gx_ref, gy_ref, part_ref,
                            *, inv_nx, inv_ny):
    """Per-tile Huber-L1 + edge-aware weighting, emits one partial sum."""
    d = d_ref[0]                                        # scalar from SMEM
    diff = pred_ref[...] - gt_ref[...]                  # (TM, W) f32
    l1 = jnp.abs(diff)
    d_safe = jnp.maximum(d, jnp.float32(1e-30))         # guard d == 0
    inv_2d = 0.5 / d_safe
    quad = (diff * diff + d * d) * inv_2d
    loss = jnp.where(l1 >= d, l1, quad)                 # (TM, W)

    # gx/gy were padded with 1e30 at the boundary column/row, so exp(-g) is
    # exactly 0 there -> single full-width weighted reduction, no masks.
    weight = (jnp.exp(-gx_ref[...]) * jnp.float32(inv_nx)
              + jnp.exp(-gy_ref[...]) * jnp.float32(inv_ny))
    partial = jnp.sum(loss * weight)
    part_ref[...] = jnp.broadcast_to(partial, part_ref.shape).astype(jnp.float32)


def _huber_map_kernel(d_ref, pred_ref, gt_ref, loss_ref):
    """Per-tile Huber-L1 map (per-pixel branch of the module)."""
    d = d_ref[0]
    diff = pred_ref[...] - gt_ref[...]
    l1 = jnp.abs(diff)
    d_safe = jnp.maximum(d, jnp.float32(1e-30))
    quad = (diff * diff + d * d) * (0.5 / d_safe)
    loss_ref[...] = jnp.where(l1 >= d, l1, quad)


@functools.partial(jax.jit, static_argnames=("tresh", "implementation", "tile_rows"))
def huber_l1(pred, gt, rgb, tresh=TRESH, implementation="scalar",
             tile_rows=TILE_ROWS):
    """Pallas implementation of HuberL1.forward.

    pred, gt : any shape with H*W elements (flattened, like the torch reshape)
    rgb      : (..., H, W, 3) channels-last; leading batch dims (if any) must be 1
    """
    assert H % tile_rows == 0
    num_tiles = H // tile_rows

    pred2 = pred.reshape(H, W).astype(jnp.float32)
    gt2 = gt.reshape(H, W).astype(jnp.float32)

    # --- pass 1 (cheap, wrapper-side): global threshold d -------------------
    d = jnp.float32(tresh) * jnp.max(jnp.abs(pred2 - gt2))
    d_arr = d.reshape(1)                                  # scalar-prefetch operand

    row_spec = pl.BlockSpec((tile_rows, W), lambda i, d_sref: (i, 0))

    if implementation == "scalar":
        # --- image gradients on the native HWC layout (no transpose) --------
        rgb_f = rgb.reshape(H, W, C).astype(jnp.float32)
        gx = jnp.mean(jnp.abs(rgb_f[:, :-1, :] - rgb_f[:, 1:, :]), axis=-1)  # (H, W-1)
        gy = jnp.mean(jnp.abs(rgb_f[:-1, :, :] - rgb_f[1:, :, :]), axis=-1)  # (H-1, W)
        gx_full = jnp.pad(gx, ((0, 0), (0, 1)), constant_values=_BIG)        # (H, W)
        gy_full = jnp.pad(gy, ((0, 1), (0, 0)), constant_values=_BIG)        # (H, W)

        kernel = functools.partial(
            _huber_l1_scalar_kernel,
            inv_nx=1.0 / (H * (W - 1)),
            inv_ny=1.0 / ((H - 1) * W),
        )
        partials = pl.pallas_call(
            kernel,
            grid_spec=pltpu.PrefetchScalarGridSpec(
                num_scalar_prefetch=1,
                grid=(num_tiles,),
                in_specs=[row_spec, row_spec, row_spec, row_spec],
                out_specs=pl.BlockSpec((1, 1, 128), lambda i, d_sref: (i, 0, 0)),
            ),
            out_shape=jax.ShapeDtypeStruct((num_tiles, 1, 128), jnp.float32),
            compiler_params=pltpu.CompilerParams(
                dimension_semantics=("parallel",)),
        )(d_arr, pred2, gt2, gx_full, gy_full)
        return jnp.sum(partials[:, 0, 0])

    else:
        loss_map = pl.pallas_call(
            _huber_map_kernel,
            grid_spec=pltpu.PrefetchScalarGridSpec(
                num_scalar_prefetch=1,
                grid=(num_tiles,),
                in_specs=[row_spec, row_spec],
                out_specs=row_spec,
            ),
            out_shape=jax.ShapeDtypeStruct((H, W), jnp.float32),
            compiler_params=pltpu.CompilerParams(
                dimension_semantics=("parallel",)),
        )(d_arr, pred2, gt2)
        # matches torch shape (1, 512, 512, 1)
        return loss_map.reshape(1, H, W, 1)


def huber_l1_ref(pred, gt, rgb, tresh=TRESH, implementation="scalar"):
    """Pure-JAX reference mirroring the PyTorch forward."""
    p = pred.reshape(-1).astype(jnp.float32)
    g = gt.reshape(-1).astype(jnp.float32)
    diff = p - g
    l1 = jnp.abs(diff)
    d = tresh * jnp.max(l1)
    loss = jnp.where(l1 >= d, l1, (diff * diff + d * d) / (2.0 * d))
    loss = loss.reshape(H, W)[None, ..., None]            # (1, H, W, 1)
    if implementation != "scalar":
        return loss
    rgb_f = rgb.reshape(H, W, C).astype(jnp.float32)
    gx = jnp.mean(jnp.abs(rgb_f[:, :-1, :] - rgb_f[:, 1:, :]), -1, keepdims=True)
    gy = jnp.mean(jnp.abs(rgb_f[:-1, :, :] - rgb_f[1:, :, :]), -1, keepdims=True)
    loss_x = jnp.exp(-gx) * loss[:, :, :-1, :]
    loss_y = jnp.exp(-gy) * loss[:, :-1, :, :]
    return jnp.mean(loss_x) + jnp.mean(loss_y)


if __name__ == "__main__":
    key = jax.random.PRNGKey(0)
    k_pred, k_gt, k_rgb = jax.random.split(key, 3)
    # shapes forced by the module's hard-coded reshape(512, 512)
    pred = jax.random.normal(k_pred, (H * W,), dtype=jnp.float32)
    gt = jax.random.normal(k_gt, (H * W,), dtype=jnp.float32)
    rgb = jax.random.uniform(k_rgb, (H, W, C), dtype=jnp.float32)

    # scalar branch
    out = jax.block_until_ready(
        huber_l1(pred, gt, rgb, tresh=TRESH, implementation="scalar"))
    ref = jax.block_until_ready(
        huber_l1_ref(pred, gt, rgb, tresh=TRESH, implementation="scalar"))
    assert jnp.isfinite(out), "kernel produced non-finite result"
    assert jnp.allclose(out, ref, rtol=1e-4, atol=1e-5), (out, ref)

    # per-pixel branch
    out_map = jax.block_until_ready(
        huber_l1(pred, gt, rgb, tresh=TRESH, implementation="per-pixel"))
    ref_map = jax.block_until_ready(
        huber_l1_ref(pred, gt, rgb, tresh=TRESH, implementation="per-pixel"))
    assert out_map.shape == (1, H, W, 1)
    assert jnp.allclose(out_map, ref_map, rtol=1e-4, atol=1e-6)

    print("KERNEL_OK")
</pallas_src>

<mosaic_0001>
module attributes {stable_mosaic.version = 11 : i64} {
  func.func @_huber_l1_scalar_kernel(%arg0: i32, %arg1: memref<1xf32, #tpu.memory_space<smem>>, %arg2: memref<128x512xf32, #tpu.memory_space<vmem>>, %arg3: memref<128x512xf32, #tpu.memory_space<vmem>>, %arg4: memref<128x512xf32, #tpu.memory_space<vmem>>, %arg5: memref<128x512xf32, #tpu.memory_space<vmem>>, %arg6: memref<1x1x128xf32, #tpu.memory_space<vmem>>) attributes {dimension_semantics = [#tpu.dimension_semantics<parallel>], iteration_bounds = array<i64: 4>, scalar_prefetch = 1 : i64, scratch_operands = 0 : i64, tpu.core_type = #tpu.core_type<tc>, window_params = [{transform_indices = @transform_0, window_bounds = array<i64: 128, 512>}, {transform_indices = @transform_1, window_bounds = array<i64: 128, 512>}, {transform_indices = @transform_2, window_bounds = array<i64: 128, 512>}, {transform_indices = @transform_3, window_bounds = array<i64: 128, 512>}, {transform_indices = @transform_4, window_bounds = array<i64: 1, 1, 128>}]} {
    %c0 = arith.constant 0 : index
    %0 = memref.load %arg1[%c0] : memref<1xf32, #tpu.memory_space<smem>>
    %c0_0 = arith.constant 0 : index
    %c0_1 = arith.constant 0 : index
    %1 = vector.load %arg2[%c0_0, %c0_1] : memref<128x512xf32, #tpu.memory_space<vmem>>, vector<128x512xf32>
    %c0_2 = arith.constant 0 : index
    %c0_3 = arith.constant 0 : index
    %2 = vector.load %arg3[%c0_2, %c0_3] : memref<128x512xf32, #tpu.memory_space<vmem>>, vector<128x512xf32>
    %3 = arith.subf %1, %2 : vector<128x512xf32>
    %4 = math.absf %3 : vector<128x512xf32>
    %cst = arith.constant 1.000000e-30 : f32
    %5 = arith.maximumf %0, %cst : f32
    %cst_4 = arith.constant 5.000000e-01 : f32
    %6 = arith.divf %cst_4, %5 : f32
    %7 = arith.mulf %3, %3 : vector<128x512xf32>
    %8 = arith.mulf %0, %0 : f32
    %9 = vector.broadcast %8 : f32 to vector<128x512xf32>
    %10 = arith.addf %7, %9 : vector<128x512xf32>
    %11 = vector.broadcast %6 : f32 to vector<128x512xf32>
    %12 = arith.mulf %10, %11 : vector<128x512xf32>
    %13 = vector.broadcast %0 : f32 to vector<128x512xf32>
    %14 = arith.cmpf oge, %4, %13 : vector<128x512xf32>
    %15 = arith.select %14, %4, %12 : vector<128x512xi1>, vector<128x512xf32>
    %c0_5 = arith.constant 0 : index
    %c0_6 = arith.constant 0 : index
    %16 = vector.load %arg4[%c0_5, %c0_6] : memref<128x512xf32, #tpu.memory_space<vmem>>, vector<128x512xf32>
    %cst_7 = arith.constant 0.000000e+00 : f32
    %17 = vector.broadcast %cst_7 : f32 to vector<128x512xf32>
    %18 = arith.subf %17, %16 : vector<128x512xf32>
    %19 = math.exp %18 : vector<128x512xf32>
    %cst_8 = arith.constant 3.8221624E-6 : f32
    %20 = vector.broadcast %cst_8 : f32 to vector<128x512xf32>
    %21 = arith.mulf %19, %20 : vector<128x512xf32>
    %c0_9 = arith.constant 0 : index
    %c0_10 = arith.constant 0 : index
    %22 = vector.load %arg5[%c0_9, %c0_10] : memref<128x512xf32, #tpu.memory_space<vmem>>, vector<128x512xf32>
    %cst_11 = arith.constant 0.000000e+00 : f32
    %23 = vector.broadcast %cst_11 : f32 to vector<128x512xf32>
    %24 = arith.subf %23, %22 : vector<128x512xf32>
    %25 = math.exp %24 : vector<128x512xf32>
    %cst_12 = arith.constant 3.8221624E-6 : f32
    %26 = vector.broadcast %cst_12 : f32 to vector<128x512xf32>
    %27 = arith.mulf %25, %26 : vector<128x512xf32>
    %28 = arith.addf %21, %27 : vector<128x512xf32>
    %29 = arith.mulf %15, %28 : vector<128x512xf32>
    %30 = vector.shape_cast %29 : vector<128x512xf32> to vector<1x128x512xf32>
    %cst_13 = arith.constant dense<0.000000e+00> : vector<1xf32>
    %31 = vector.multi_reduction <add>, %30, %cst_13 [1, 2] : vector<1x128x512xf32> to vector<1xf32>
    %32 = vector.shape_cast %31 : vector<1xf32> to vector<1x1x1xf32>
    %33 = vector.extract %32[0, 0, 0] : f32 from vector<1x1x1xf32>
    %34 = vector.broadcast %33 : f32 to vector<1x1x128xf32>
    %c0_14 = arith.constant 0 : index
    %c0_15 = arith.constant 0 : index
    %c0_16 = arith.constant 0 : index
    %35 = vector.load %arg6[%c0_14, %c0_15, %c0_16] : memref<1x1x128xf32, #tpu.memory_space<vmem>>, vector<1x1x128xf32>
    tpu.vector_store %arg6[%c0_14, %c0_15, %c0_16], %34 {strides = array<i32>} : memref<1x1x128xf32, #tpu.memory_space<vmem>>, vector<1x1x128xf32>,
    return
  }
  func.func @transform_0(%arg0: i32, %arg1: memref<1xf32, #tpu.memory_space<smem>>) -> (i32, i32) {
    %c0_i32 = arith.constant 0 : i32
    %c0_i32_0 = arith.constant 0 : i32
    return %arg0, %c0_i32 : i32, i32
  }
  func.func @transform_1(%arg0: i32, %arg1: memref<1xf32, #tpu.memory_space<smem>>) -> (i32, i32) {
    %c0_i32 = arith.constant 0 : i32
    %c0_i32_0 = arith.constant 0 : i32
    return %arg0, %c0_i32 : i32, i32
  }
  func.func @transform_2(%arg0: i32, %arg1: memref<1xf32, #tpu.memory_space<smem>>) -> (i32, i32) {
    %c0_i32 = arith.constant 0 : i32
    %c0_i32_0 = arith.constant 0 : i32
    return %arg0, %c0_i32 : i32, i32
  }
  func.func @transform_3(%arg0: i32, %arg1: memref<1xf32, #tpu.memory_space<smem>>) -> (i32, i32) {
    %c0_i32 = arith.constant 0 : i32
    %c0_i32_0 = arith.constant 0 : i32
    return %arg0, %c0_i32 : i32, i32
  }
  func.func @transform_4(%arg0: i32, %arg1: memref<1xf32, #tpu.memory_space<smem>>) -> (i32, i32, i32) {
    %c0_i32 = arith.constant 0 : i32
    %c0_i32_0 = arith.constant 0 : i32
    %c0_i32_1 = arith.constant 0 : i32
    return %arg0, %c0_i32, %c0_i32_0 : i32, i32, i32
  }
}

</mosaic_0001>

<llo_original>
// kernel: huber_l1.1
$region0: #{huber_l1.1}
  #allocation0 [shape = 'u32[]', space=smem, size = 0x4, offset = 0x4, fixed_abs, tag = 'smem constant byte address 0x4 - core index']
  #allocation1 [shape = 'u32[144,128]{1,0:T(1,128)}', space=vmem, size = 0x12000, scoped, tag = 'internal scratch']
  #allocation2 [shape = 's32[1]{0}', space=sflag, size = 0x4, scoped, tag = 'scoped memory for huber_l1.1']
  #allocation3 [shape = 'f32[1]{0:T(128)S(6)}', space=smem, size = 0x200, scoped, tag = 'prefetched SMEM operand 0']
  %s0 = inlined_call_operand.<no memory space> [shape: f32[1], index: 0, kind: input, shape index: {}]
  %s1 = inlined_call_operand.vmem [shape: f32[512,512], index: 1, kind: input, shape index: {}]
  %s2 = inlined_call_operand.vmem [shape: f32[512,512], index: 2, kind: input, shape index: {}]
  %s3 = inlined_call_operand.vmem [shape: f32[512,512], index: 3, kind: input, shape index: {}]
  %s4 = inlined_call_operand.vmem [shape: f32[512,512], index: 4, kind: input, shape index: {}]
  %s5 = inlined_call_operand.vmem [shape: f32[4,1,128], index: 5, kind: output, shape index: {}]
  %s6 = sld [smem:[#allocation0]]
  $region49: #{huber_l1.1} parent=0
    _
  %s8 = ssub.s32 1, %s6
  %s9 = scalar_select 0, %s8, %s6
  %10 = sst [smem:[#allocation3]] %s0
  loop: start=0, step=1, limit=6
  $region2: #{huber_l1.1} parent=0 // loop_pre_header
    _
  $region3: #{huber_l1.1} parent=0 // loop_header
    %s12 = sphi 0, %s16
    %p13 = scmp.ge.s32.totalorder %s12, 6
    %s22 = sphi 0, %s24
    %s25 = sphi 0, %s22
    %s26 = sphi 0, %s25
    %s42 = sphi 0, %s26
    %s48 = sphi 0, %s50
    %s51 = sphi 0, %s48
    %s52 = sphi 0, %s51
    %s68 = sphi 0, %s52
    %s74 = sphi 0, %s76
    %s77 = sphi 0, %s74
    %s78 = sphi 0, %s77
    %s94 = sphi 0, %s78
    %s100 = sphi 0, %s102
    %s103 = sphi 0, %s100
    %s104 = sphi 0, %s103
    %s120 = sphi 0, %s104
    %s126 = sphi 0, %s128
    %s129 = sphi 0, %s126
    %s130 = sphi 0, %s129
    %s146 = sphi 0, %s130
  $region4: #{huber_l1.1} parent=0 // loop_header_branch
    %15 = sbr.rel (%p13) target = $region8
  $region5: #{huber_l1.1} parent=0 // loop_body
    %s17 = ssub.s32 %s12, 1
    %s18 = ssub.s32 %s12, 2
    %s19 = sadd.s32 %s12, 1
    %s20 = ssub.s32 %s12, %s19
    %p21 = scmp.eq.s32.totalorder %s20, 0
    %s23 = sadd.s32 %s22, 1
    %s24 = scalar_select %p21, %s22, %s23
    %p27 = pneg %p21
    %p28 = scmp.eq.s32.totalorder %s12, 3
    %p29 = por %p27, %p28
    %p30 = scmp.ne.s32.totalorder %s22, %s25
    %p31 = scmp.eq.s32.totalorder %s12, 0
    %p32 = por %p30, %p31
    %p33 = scmp.ne.s32.totalorder %s22, %s25
    %p34 = scmp.eq.s32.totalorder %s17, 3
    %p35 = por %p33, %p34
    %p36 = scmp.ne.s32.totalorder %s25, %s26
    %p37 = scmp.eq.s32.totalorder %s17, 0
    %p38 = por %p36, %p37
    %p39 = scmp.ne.s32.totalorder %s25, %s26
    %p40 = scmp.eq.s32.totalorder %s18, 3
    %p41 = por %p39, %p40
    %p43 = scmp.ne.s32.totalorder %s26, %s42
    %p44 = scmp.eq.s32.totalorder %s18, 0
    %p45 = por %p43, %p44
    %s46 = ssub.s32 %s12, %s19
    %p47 = scmp.eq.s32.totalorder %s46, 0
    %s49 = sadd.s32 %s48, 1
    %s50 = scalar_select %p47, %s48, %s49
    %p53 = pneg %p47
    %p54 = scmp.eq.s32.totalorder %s12, 3
    %p55 = por %p53, %p54
    %p56 = scmp.ne.s32.totalorder %s48, %s51
    %p57 = scmp.eq.s32.totalorder %s12, 0
    %p58 = por %p56, %p57
    %p59 = scmp.ne.s32.totalorder %s48, %s51
    %p60 = scmp.eq.s32.totalorder %s17, 3
    %p61 = por %p59, %p60
    %p62 = scmp.ne.s32.totalorder %s51, %s52
    %p63 = scmp.eq.s32.totalorder %s17, 0
    %p64 = por %p62, %p63
    %p65 = scmp.ne.s32.totalorder %s51, %s52
    %p66 = scmp.eq.s32.totalorder %s18, 3
    %p67 = por %p65, %p66
    %p69 = scmp.ne.s32.totalorder %s52, %s68
    %p70 = scmp.eq.s32.totalorder %s18, 0
    %p71 = por %p69, %p70
    %s72 = ssub.s32 %s12, %s19
    %p73 = scmp.eq.s32.totalorder %s72, 0
    %s75 = sadd.s32 %s74, 1
    %s76 = scalar_select %p73, %s74, %s75
    %p79 = pneg %p73
    %p80 = scmp.eq.s32.totalorder %s12, 3
    %p81 = por %p79, %p80
    %p82 = scmp.ne.s32.totalorder %s74, %s77
    %p83 = scmp.eq.s32.totalorder %s12, 0
    %p84 = por %p82, %p83
    %p85 = scmp.ne.s32.totalorder %s74, %s77
    %p86 = scmp.eq.s32.totalorder %s17, 3
    %p87 = por %p85, %p86
    %p88 = scmp.ne.s32.totalorder %s77, %s78
    %p89 = scmp.eq.s32.totalorder %s17, 0
    %p90 = por %p88, %p89
    %p91 = scmp.ne.s32.totalorder %s77, %s78
    %p92 = scmp.eq.s32.totalorder %s18, 3
    %p93 = por %p91, %p92
    %p95 = scmp.ne.s32.totalorder %s78, %s94
    %p96 = scmp.eq.s32.totalorder %s18, 0
    %p97 = por %p95, %p96
    %s98 = ssub.s32 %s12, %s19
    %p99 = scmp.eq.s32.totalorder %s98, 0
    %s101 = sadd.s32 %s100, 1
    %s102 = scalar_select %p99, %s100, %s101
    %p105 = pneg %p99
    %p106 = scmp.eq.s32.totalorder %s12, 3
    %p107 = por %p105, %p106
    %p108 = scmp.ne.s32.totalorder %s100, %s103
    %p109 = scmp.eq.s32.totalorder %s12, 0
    %p110 = por %p108, %p109
    %p111 = scmp.ne.s32.totalorder %s100, %s103
    %p112 = scmp.eq.s32.totalorder %s17, 3
    %p113 = por %p111, %p112
    %p114 = scmp.ne.s32.totalorder %s103, %s104
    %p115 = scmp.eq.s32.totalorder %s17, 0
    %p116 = por %p114, %p115
    %p117 = scmp.ne.s32.totalorder %s103, %s104
    %p118 = scmp.eq.s32.totalorder %s18, 3
    %p119 = por %p117, %p118
    %p121 = scmp.ne.s32.totalorder %s104, %s120
    %p122 = scmp.eq.s32.totalorder %s18, 0
    %p123 = por %p121, %p122
    %s124 = ssub.s32 %s12, %s19
    %p125 = scmp.eq.s32.totalorder %s124, 0
    %s127 = sadd.s32 %s126, 1
    %s128 = scalar_select %p125, %s126, %s127
    %p131 = pneg %p125
    %p132 = scmp.eq.s32.totalorder %s12, 3
    %p133 = por %p131, %p132
    %p134 = scmp.ne.s32.totalorder %s126, %s129
    %p135 = scmp.eq.s32.totalorder %s12, 0
    %p136 = por %p134, %p135
    %p137 = scmp.ne.s32.totalorder %s126, %s129
    %p138 = scmp.eq.s32.totalorder %s17, 3
    %p139 = por %p137, %p138
    %p140 = scmp.ne.s32.totalorder %s129, %s130
    %p141 = scmp.eq.s32.totalorder %s17, 0
    %p142 = por %p140, %p141
    %p143 = scmp.ne.s32.totalorder %s129, %s130
    %p144 = scmp.eq.s32.totalorder %s18, 3
    %p145 = por %p143, %p144
    %p147 = scmp.ne.s32.totalorder %s130, %s146
    %p148 = scmp.eq.s32.totalorder %s18, 0
    %p149 = por %p147, %p148
    %p150 = scmp.le.s32.totalorder 1, %s12
    %p151 = scmp.lt.s32.totalorder %s12, 5
    %p152 = pnand %p150, %p151
    %p153 = pneg %p152
    // Predicated region
    $region9: #{huber_l1.1} parent=5 // pred_check
      _
    $region10: #{huber_l1.1} parent=5 // pred_check_branch
      %155 = sbr.rel (%p152) target = $region12
    $region11: #{huber_l1.1} parent=5 // pred_region
      %s156 = ssub.s32 %s12, 1
    $region12: #{huber_l1.1} parent=5 // pred_fallthru
      _
    %p157 = scmp.lt.s32.totalorder %s12, 4
    // Predicated region
    $region13: #{huber_l1.1} parent=5 // pred_check
      %p158 = pneg %p157
    $region14: #{huber_l1.1} parent=5 // pred_check_branch
      %160 = sbr.rel (%p158) target = $region16
    $region15: #{huber_l1.1} parent=5 // pred_region
      // Predicated region
      $region17: #{huber_l1.1} parent=15 // pred_check
        %p161 = pneg %p32
      $region18: #{huber_l1.1} parent=15 // pred_check_branch
        %163 = sbr.rel (%p161) target = $region20
      $region19: #{huber_l1.1} parent=15 // pred_region
        %s164 = smul.u32 16, %s12
        %p165 = scmp.lt.s32.totalorder %s164, 63
        %s166 = scalar_select %p165, %s164, 63
        %s167 = smul.addr %s166, 4
        %s168 = smul.addr %s167, 8
        %s169 = scalar_lea.vmem %s1, %s168
        %s170 = smul.u32 16, %s12
      $region20: #{huber_l1.1} parent=15 // pred_fallthru
        _
      // Predicated region
      $region21: #{huber_l1.1} parent=15 // pred_check
        %p171 = pneg %p58
      $region22: #{huber_l1.1} parent=15 // pred_check_branch
        %173 = sbr.rel (%p171) target = $region24
      $region23: #{huber_l1.1} parent=15 // pred_region
        %s174 = smul.u32 16, %s12
        %p175 = scmp.lt.s32.totalorder %s174, 63
        %s176 = scalar_select %p175, %s174, 63
        %s177 = smul.addr %s176, 4
        %s178 = smul.addr %s177, 8
        %s179 = scalar_lea.vmem %s2, %s178
        %s180 = smul.u32 16, %s12
      $region24: #{huber_l1.1} parent=15 // pred_fallthru
        _
      // Predicated region
      $region25: #{huber_l1.1} parent=15 // pred_check
        %p181 = pneg %p84
      $region26: #{huber_l1.1} parent=15 // pred_check_branch
        %183 = sbr.rel (%p181) target = $region28
      $region27: #{huber_l1.1} parent=15 // pred_region
        %s184 = smul.u32 16, %s12
        %p185 = scmp.lt.s32.totalorder %s184, 63
        %s186 = scalar_select %p185, %s184, 63
        %s187 = smul.addr %s186, 4
        %s188 = smul.addr %s187, 8
        %s189 = scalar_lea.vmem %s3, %s188
        %s190 = smul.u32 16, %s12
      $region28: #{huber_l1.1} parent=15 // pred_fallthru
        _
      // Predicated region
      $region29: #{huber_l1.1} parent=15 // pred_check
        %p191 = pneg %p110
      $region30: #{huber_l1.1} parent=15 // pred_check_branch
        %193 = sbr.rel (%p191) target = $region32
      $region31: #{huber_l1.1} parent=15 // pred_region
        %s194 = smul.u32 16, %s12
        %p195 = scmp.lt.s32.totalorder %s194, 63
        %s196 = scalar_select %p195, %s194, 63
        %s197 = smul.addr %s196, 4
        %s198 = smul.addr %s197, 8
        %s199 = scalar_lea.vmem %s4, %s198
        %s200 = smul.u32 16, %s12
      $region32: #{huber_l1.1} parent=15 // pred_fallthru
        _
    $region16: #{huber_l1.1} parent=5 // pred_fallthru
      _
    %p201 = scmp.le.s32.totalorder 1, %s12
    %p202 = scmp.lt.s32.totalorder %s12, 5
    %p203 = pnand %p201, %p202
    %p204 = pneg %p203
    // Predicated region
    $region33: #{huber_l1.1} parent=5 // pred_check
      _
    $region34: #{huber_l1.1} parent=5 // pred_check_branch
      %206 = sbr.rel (%p203) target = $region36
    $region35: #{huber_l1.1} parent=5 // pred_region
      %s207 = ssub.s32 %s12, 1
      %s208 = smul.u32 16, %s17
      %p209 = scmp.lt.s32.totalorder %s208, 63
      %s210 = scalar_select %p209, %s208, 63
      %s211 = smul.addr %s210, 4
      %s212 = smul.addr %s211, 8
      %s213 = scalar_lea.vmem %s1, %s212
      %p214 = pneg %p38
      %p215 = pneg %p35
      %s216 = smul.u32 16, %s17
      %p217 = scmp.lt.s32.totalorder %s216, 63
      %s218 = scalar_select %p217, %s216, 63
      %s219 = smul.addr %s218, 4
      %s220 = smul.addr %s219, 8
      %s221 = scalar_lea.vmem %s2, %s220
      %p222 = pneg %p64
      %p223 = pneg %p61
      %s224 = smul.u32 16, %s17
      %p225 = scmp.lt.s32.totalorder %s224, 63
      %s226 = scalar_select %p225, %s224, 63
      %s227 = smul.addr %s226, 4
      %s228 = smul.addr %s227, 8
      %s229 = scalar_lea.vmem %s3, %s228
      %p230 = pneg %p90
      %p231 = pneg %p87
      %s232 = smul.u32 16, %s17
      %p233 = scmp.lt.s32.totalorder %s232, 63
      %s234 = scalar_select %p233, %s232, 63
      %s235 = smul.addr %s234, 4
      %s236 = smul.addr %s235, 8
      %s237 = scalar_lea.vmem %s4, %s236
      %p238 = pneg %p116
      %p239 = pneg %p113
      %p240 = pneg %p142
      %p241 = pneg %p139
      %p242 = scmp.lt.s32.totalorder %s17, 3
      %s243 = scalar_select %p242, %s17, 3
      %s244 = scalar_lea.vmem %s5, %s243
      %s245 = smul.u32 16, %s17
      %p246 = scmp.lt.s32.totalorder %s245, 63
      %s247 = scalar_select %p246, %s245, 63
      %s248 = smul.addr %s247, 4
      %s249 = smul.addr %s248, 8
      %s250 = scalar_lea.vmem %s1, %s249
      %s251 = smul.u32 16, %s17
      %s252 = smul.u32 16, %s17
      %p253 = scmp.lt.s32.totalorder %s252, 63
      %s254 = scalar_select %p253, %s252, 63
      %s255 = smul.addr %s254, 4
      %s256 = smul.addr %s255, 8
      %s257 = scalar_lea.vmem %s2, %s256
      %s258 = smul.u32 16, %s17
      %s259 = smul.u32 16, %s17
      %p260 = scmp.lt.s32.totalorder %s259, 63
      %s261 = scalar_select %p260, %s259, 63
      %s262 = smul.addr %s261, 4
      %s263 = smul.addr %s262, 8
      %s264 = scalar_lea.vmem %s3, %s263
      %s265 = smul.u32 16, %s17
      %s266 = smul.u32 16, %s17
      %p267 = scmp.lt.s32.totalorder %s266, 63
      %s268 = scalar_select %p267, %s266, 63
      %s269 = smul.addr %s268, 4
      %s270 = smul.addr %s269, 8
      %s271 = scalar_lea.vmem %s4, %s270
      %s272 = smul.u32 16, %s17
      %p273 = scmp.lt.s32.totalorder %s17, 3
      %s274 = scalar_select %p273, %s17, 3
      %s275 = scalar_lea.vmem %s5, %s274
      %s276 = sld [smem:[#allocation3]]
      %v277 = vld [vmem:[%s250] sm:$0xff]
      %v278 = vld [vmem:[%s250 + $0x8] sm:$0xff]
      %v279 = vld [vmem:[%s250 + $0x10] sm:$0xff]
      %v280 = vld [vmem:[%s250 + $0x18] sm:$0xff]
      %v281 = vld [vmem:[%s250 + $0x20] sm:$0xff]
      %v282 = vld [vmem:[%s250 + $0x28] sm:$0xff]
      %v283 = vld [vmem:[%s250 + $0x30] sm:$0xff]
      %v284 = vld [vmem:[%s250 + $0x38] sm:$0xff]
      %v285 = vld [vmem:[%s250 + $0x40] sm:$0xff]
      %v286 = vld [vmem:[%s250 + $0x48] sm:$0xff]
      %v287 = vld [vmem:[%s250 + $0x50] sm:$0xff]
      %v288 = vld [vmem:[%s250 + $0x58] sm:$0xff]
      %v289 = vld [vmem:[%s250 + $0x60] sm:$0xff]
      %v290 = vld [vmem:[%s250 + $0x68] sm:$0xff]
      %v291 = vld [vmem:[%s250 + $0x70] sm:$0xff]
      %v292 = vld [vmem:[%s250 + $0x78] sm:$0xff]
      %v293 = vld [vmem:[%s250 + $0x80] sm:$0xff]
      %v294 = vld [vmem:[%s250 + $0x88] sm:$0xff]
      %v295 = vld [vmem:[%s250 + $0x90] sm:$0xff]
      %v296 = vld [vmem:[%s250 + $0x98] sm:$0xff]
      %v297 = vld [vmem:[%s250 + $0xa0] sm:$0xff]
      %v298 = vld [vmem:[%s250 + $0xa8] sm:$0xff]
      %v299 = vld [vmem:[%s250 + $0xb0] sm:$0xff]
      %v300 = vld [vmem:[%s250 + $0xb8] sm:$0xff]
      %v301 = vld [vmem:[%s250 + $0xc0] sm:$0xff]
      %v302 = vld [vmem:[%s250 + $0xc8] sm:$0xff]
      %v303 = vld [vmem:[%s250 + $0xd0] sm:$0xff]
      %v304 = vld [vmem:[%s250 + $0xd8] sm:$0xff]
      %v305 = vld [vmem:[%s250 + $0xe0] sm:$0xff]
      %v306 = vld [vmem:[%s250 + $0xe8] sm:$0xff]
      %v307 = vld [vmem:[%s250 + $0xf0] sm:$0xff]
      %v308 = vld [vmem:[%s250 + $0xf8] sm:$0xff]
      %v309 = vld [vmem:[%s250 + $0x100] sm:$0xff]
      %v310 = vld [vmem:[%s250 + $0x108] sm:$0xff]
      %v311 = vld [vmem:[%s250 + $0x110] sm:$0xff]
      %v312 = vld [vmem:[%s250 + $0x118] sm:$0xff]
      %v313 = vld [vmem:[%s250 + $0x120] sm:$0xff]
      %v314 = vld [vmem:[%s250 + $0x128] sm:$0xff]
      %v315 = vld [vmem:[%s250 + $0x130] sm:$0xff]
      %v316 = vld [vmem:[%s250 + $0x138] sm:$0xff]
      %v317 = vld [vmem:[%s250 + $0x140] sm:$0xff]
      %v318 = vld [vmem:[%s250 + $0x148] sm:$0xff]
      %v319 = vld [vmem:[%s250 + $0x150] sm:$0xff]
      %v320 = vld [vmem:[%s250 + $0x158] sm:$0xff]
      %v321 = vld [vmem:[%s250 + $0x160] sm:$0xff]
      %v322 = vld [vmem:[%s250 + $0x168] sm:$0xff]
      %v323 = vld [vmem:[%s250 + $0x170] sm:$0xff]
      %v324 = vld [vmem:[%s250 + $0x178] sm:$0xff]
      %v325 = vld [vmem:[%s250 + $0x180] sm:$0xff]
      %v326 = vld [vmem:[%s250 + $0x188] sm:$0xff]
      %v327 = vld [vmem:[%s250 + $0x190] sm:$0xff]
      %v328 = vld [vmem:[%s250 + $0x198] sm:$0xff]
      %v329 = vld [vmem:[%s250 + $0x1a0] sm:$0xff]
      %v330 = vld [vmem:[%s250 + $0x1a8] sm:$0xff]
      %v331 = vld [vmem:[%s250 + $0x1b0] sm:$0xff]
      %v332 = vld [vmem:[%s250 + $0x1b8] sm:$0xff]
      %v333 = vld [vmem:[%s250 + $0x1c0] sm:$0xff]
      %v334 = vld [vmem:[%s250 + $0x1c8] sm:$0xff]
      %v335 = vld [vmem:[%s250 + $0x1d0] sm:$0xff]
      %v336 = vld [vmem:[%s250 + $0x1d8] sm:$0xff]
      %v337 = vld [vmem:[%s250 + $0x1e0] sm:$0xff]
      %v338 = vld [vmem:[%s250 + $0x1e8] sm:$0xff]
      %v339 = vld [vmem:[%s250 + $0x1f0] sm:$0xff]
      %v340 = vld [vmem:[%s250 + $0x1f8] sm:$0xff]
      %v341 = vld [vmem:[%s257] sm:$0xff]
      %v342 = vld [vmem:[%s257 + $0x8] sm:$0xff]
      %v343 = vld [vmem:[%s257 + $0x10] sm:$0xff]
      %v344 = vld [vmem:[%s257 + $0x18] sm:$0xff]
      %v345 = vld [vmem:[%s257 + $0x20] sm:$0xff]
      %v346 = vld [vmem:[%s257 + $0x28] sm:$0xff]
      %v347 = vld [vmem:[%s257 + $0x30] sm:$0xff]
      %v348 = vld [vmem:[%s257 + $0x38] sm:$0xff]
      %v349 = vld [vmem:[%s257 + $0x40] sm:$0xff]
      %v350 = vld [vmem:[%s257 + $0x48] sm:$0xff]
      %v351 = vld [vmem:[%s257 + $0x50] sm:$0xff]
      %v352 = vld [vmem:[%s257 + $0x58] sm:$0xff]
      %v353 = vld [vmem:[%s257 + $0x60] sm:$0xff]
      %v354 = vld [vmem:[%s257 + $0x68] sm:$0xff]
      %v355 = vld [vmem:[%s257 + $0x70] sm:$0xff]
      %v356 = vld [vmem:[%s257 + $0x78] sm:$0xff]
      %v357 = vld [vmem:[%s257 + $0x80] sm:$0xff]
      %v358 = vld [vmem:[%s257 + $0x88] sm:$0xff]
      %v359 = vld [vmem:[%s257 + $0x90] sm:$0xff]
      %v360 = vld [vmem:[%s257 + $0x98] sm:$0xff]
      %v361 = vld [vmem:[%s257 + $0xa0] sm:$0xff]
      %v362 = vld [vmem:[%s257 + $0xa8] sm:$0xff]
      %v363 = vld [vmem:[%s257 + $0xb0] sm:$0xff]
      %v364 = vld [vmem:[%s257 + $0xb8] sm:$0xff]
      %v365 = vld [vmem:[%s257 + $0xc0] sm:$0xff]
      %v366 = vld [vmem:[%s257 + $0xc8] sm:$0xff]
      %v367 = vld [vmem:[%s257 + $0xd0] sm:$0xff]
      %v368 = vld [vmem:[%s257 + $0xd8] sm:$0xff]
      %v369 = vld [vmem:[%s257 + $0xe0] sm:$0xff]
      %v370 = vld [vmem:[%s257 + $0xe8] sm:$0xff]
      %v371 = vld [vmem:[%s257 + $0xf0] sm:$0xff]
      %v372 = vld [vmem:[%s257 + $0xf8] sm:$0xff]
      %v373 = vld [vmem:[%s257 + $0x100] sm:$0xff]
      %v374 = vld [vmem:[%s257 + $0x108] sm:$0xff]
      %v375 = vld [vmem:[%s257 + $0x110] sm:$0xff]
      %v376 = vld [vmem:[%s257 + $0x118] sm:$0xff]
      %v377 = vld [vmem:[%s257 + $0x120] sm:$0xff]
      %v378 = vld [vmem:[%s257 + $0x128] sm:$0xff]
      %v379 = vld [vmem:[%s257 + $0x130] sm:$0xff]
      %v380 = vld [vmem:[%s257 + $0x138] sm:$0xff]
      %v381 = vld [vmem:[%s257 + $0x140] sm:$0xff]
      %v382 = vld [vmem:[%s257 + $0x148] sm:$0xff]
      %v383 = vld [vmem:[%s257 + $0x150] sm:$0xff]
      %v384 = vld [vmem:[%s257 + $0x158] sm:$0xff]
      %v385 = vld [vmem:[%s257 + $0x160] sm:$0xff]
      %v386 = vld [vmem:[%s257 + $0x168] sm:$0xff]
      %v387 = vld [vmem:[%s257 + $0x170] sm:$0xff]
      %v388 = vld [vmem:[%s257 + $0x178] sm:$0xff]
      %v389 = vld [vmem:[%s257 + $0x180] sm:$0xff]
      %v390 = vld [vmem:[%s257 + $0x188] sm:$0xff]
      %v391 = vld [vmem:[%s257 + $0x190] sm:$0xff]
      %v392 = vld [vmem:[%s257 + $0x198] sm:$0xff]
      %v393 = vld [vmem:[%s257 + $0x1a0] sm:$0xff]
      %v394 = vld [vmem:[%s257 + $0x1a8] sm:$0xff]
      %v395 = vld [vmem:[%s257 + $0x1b0] sm:$0xff]
      %v396 = vld [vmem:[%s257 + $0x1b8] sm:$0xff]
      %v397 = vld [vmem:[%s257 + $0x1c0] sm:$0xff]
      %v398 = vld [vmem:[%s257 + $0x1c8] sm:$0xff]
      %v399 = vld [vmem:[%s257 + $0x1d0] sm:$0xff]
      %v400 = vld [vmem:[%s257 + $0x1d8] sm:$0xff]
      %v401 = vld [vmem:[%s257 + $0x1e0] sm:$0xff]
      %v402 = vld [vmem:[%s257 + $0x1e8] sm:$0xff]
      %v403 = vld [vmem:[%s257 + $0x1f0] sm:$0xff]
      %v404 = vld [vmem:[%s257 + $0x1f8] sm:$0xff]
      %v405 = vsub.f32 %v277, %v341
      %v406 = vsub.f32 %v278, %v342
      %v407 = vsub.f32 %v279, %v343
      %v408 = vsub.f32 %v280, %v344
      %v409 = vsub.f32 %v281, %v345
      %v410 = vsub.f32 %v282, %v346
      %v411 = vsub.f32 %v283, %v347
      %v412 = vsub.f32 %v284, %v348
      %v413 = vsub.f32 %v285, %v349
      %v414 = vsub.f32 %v286, %v350
      %v415 = vsub.f32 %v287, %v351
      %v416 = vsub.f32 %v288, %v352
      %v417 = vsub.f32 %v289, %v353
      %v418 = vsub.f32 %v290, %v354
      %v419 = vsub.f32 %v291, %v355
      %v420 = vsub.f32 %v292, %v356
      %v421 = vsub.f32 %v293, %v357
      %v422 = vsub.f32 %v294, %v358
      %v423 = vsub.f32 %v295, %v359
      %v424 = vsub.f32 %v296, %v360
      %v425 = vsub.f32 %v297, %v361
      %v426 = vsub.f32 %v298, %v362
      %v427 = vsub.f32 %v299, %v363
      %v428 = vsub.f32 %v300, %v364
      %v429 = vsub.f32 %v301, %v365
      %v430 = vsub.f32 %v302, %v366
      %v431 = vsub.f32 %v303, %v367
      %v432 = vsub.f32 %v304, %v368
      %v433 = vsub.f32 %v305, %v369
      %v434 = vsub.f32 %v306, %v370
      %v435 = vsub.f32 %v307, %v371
      %v436 = vsub.f32 %v308, %v372
      %v437 = vsub.f32 %v309, %v373
      %v438 = vsub.f32 %v310, %v374
      %v439 = vsub.f32 %v311, %v375
      %v440 = vsub.f32 %v312, %v376
      %v441 = vsub.f32 %v313, %v377
      %v442 = vsub.f32 %v314, %v378
      %v443 = vsub.f32 %v315, %v379
      %v444 = vsub.f32 %v316, %v380
      %v445 = vsub.f32 %v317, %v381
      %v446 = vsub.f32 %v318, %v382
      %v447 = vsub.f32 %v319, %v383
      %v448 = vsub.f32 %v320, %v384
      %v449 = vsub.f32 %v321, %v385
      %v450 = vsub.f32 %v322, %v386
      %v451 = vsub.f32 %v323, %v387
      %v452 = vsub.f32 %v324, %v388
      %v453 = vsub.f32 %v325, %v389
      %v454 = vsub.f32 %v326, %v390
      %v455 = vsub.f32 %v327, %v391
      %v456 = vsub.f32 %v328, %v392
      %v457 = vsub.f32 %v329, %v393
      %v458 = vsub.f32 %v330, %v394
      %v459 = vsub.f32 %v331, %v395
      %v460 = vsub.f32 %v332, %v396
      %v461 = vsub.f32 %v333, %v397
      %v462 = vsub.f32 %v334, %v398
      %v463 = vsub.f32 %v335, %v399
      %v464 = vsub.f32 %v336, %v400
      %v465 = vsub.f32 %v337, %v401
      %v466 = vsub.f32 %v338, %v402
      %v467 = vsub.f32 %v339, %v403
      %v468 = vsub.f32 %v340, %v404
      %v469 = vand.u32 2147483647, %v405
      %v470 = vand.u32 2147483647, %v406
      %v471 = vand.u32 2147483647, %v407
      %v472 = vand.u32 2147483647, %v408
      %v473 = vand.u32 2147483647, %v409
      %v474 = vand.u32 2147483647, %v410
      %v475 = vand.u32 2147483647, %v411
      %v476 = vand.u32 2147483647, %v412
      %v477 = vand.u32 2147483647, %v413
      %v478 = vand.u32 2147483647, %v414
      %v479 = vand.u32 2147483647, %v415
      %v480 = vand.u32 2147483647, %v416
      %v481 = vand.u32 2147483647, %v417
      %v482 = vand.u32 2147483647, %v418
      %v483 = vand.u32 2147483647, %v419
      %v484 = vand.u32 2147483647, %v420
      %v485 = vand.u32 2147483647, %v421
      %v486 = vand.u32 2147483647, %v422
      %v487 = vand.u32 2147483647, %v423
      %v488 = vand.u32 2147483647, %v424
      %v489 = vand.u32 2147483647, %v425
      %v490 = vand.u32 2147483647, %v426
      %v491 = vand.u32 2147483647, %v427
      %v492 = vand.u32 2147483647, %v428
      %v493 = vand.u32 2147483647, %v429
      %v494 = vand.u32 2147483647, %v430
      %v495 = vand.u32 2147483647, %v431
      %v496 = vand.u32 2147483647, %v432
      %v497 = vand.u32 2147483647, %v433
      %v498 = vand.u32 2147483647, %v434
      %v499 = vand.u32 2147483647, %v435
      %v500 = vand.u32 2147483647, %v436
      %v501 = vand.u32 2147483647, %v437
      %v502 = vand.u32 2147483647, %v438
      %v503 = vand.u32 2147483647, %v439
      %v504 = vand.u32 2147483647, %v440
      %v505 = vand.u32 2147483647, %v441
      %v506 = vand.u32 2147483647, %v442
      %v507 = vand.u32 2147483647, %v443
      %v508 = vand.u32 2147483647, %v444
      %v509 = vand.u32 2147483647, %v445
      %v510 = vand.u32 2147483647, %v446
      %v511 = vand.u32 2147483647, %v447
      %v512 = vand.u32 2147483647, %v448
      %v513 = vand.u32 2147483647, %v449
      %v514 = vand.u32 2147483647, %v450
      %v515 = vand.u32 2147483647, %v451
      %v516 = vand.u32 2147483647, %v452
      %v517 = vand.u32 2147483647, %v453
      %v518 = vand.u32 2147483647, %v454
      %v519 = vand.u32 2147483647, %v455
      %v520 = vand.u32 2147483647, %v456
      %v521 = vand.u32 2147483647, %v457
      %v522 = vand.u32 2147483647, %v458
      %v523 = vand.u32 2147483647, %v459
      %v524 = vand.u32 2147483647, %v460
      %v525 = vand.u32 2147483647, %v461
      %v526 = vand.u32 2147483647, %v462
      %v527 = vand.u32 2147483647, %v463
      %v528 = vand.u32 2147483647, %v464
      %v529 = vand.u32 2147483647, %v465
      %v530 = vand.u32 2147483647, %v466
      %v531 = vand.u32 2147483647, %v467
      %v532 = vand.u32 2147483647, %v468
      %s533 = smax.f32 %s276, 1e-30
      %v534 = vstv %s533
      %v535 = vrcp.pop %v534
      %s536 = vtos %v535
      %s537 = smul.f32 0.5, %s536
      %v538 = vmul.f32 %v405, %v405
      %v539 = vmul.f32 %v406, %v406
      %v540 = vmul.f32 %v407, %v407
      %v541 = vmul.f32 %v408, %v408
      %v542 = vmul.f32 %v409, %v409
      %v543 = vmul.f32 %v410, %v410
      %v544 = vmul.f32 %v411, %v411
      %v545 = vmul.f32 %v412, %v412
      %v546 = vmul.f32 %v413, %v413
      %v547 = vmul.f32 %v414, %v414
      %v548 = vmul.f32 %v415, %v415
      %v549 = vmul.f32 %v416, %v416
      %v550 = vmul.f32 %v417, %v417
      %v551 = vmul.f32 %v418, %v418
      %v552 = vmul.f32 %v419, %v419
      %v553 = vmul.f32 %v420, %v420
      %v554 = vmul.f32 %v421, %v421
      %v555 = vmul.f32 %v422, %v422
      %v556 = vmul.f32 %v423, %v423
      %v557 = vmul.f32 %v424, %v424
      %v558 = vmul.f32 %v425, %v425
      %v559 = vmul.f32 %v426, %v426
      %v560 = vmul.f32 %v427, %v427
      %v561 = vmul.f32 %v428, %v428
      %v562 = vmul.f32 %v429, %v429
      %v563 = vmul.f32 %v430, %v430
      %v564 = vmul.f32 %v431, %v431
      %v565 = vmul.f32 %v432, %v432
      %v566 = vmul.f32 %v433, %v433
      %v567 = vmul.f32 %v434, %v434
      %v568 = vmul.f32 %v435, %v435
      %v569 = vmul.f32 %v436, %v436
      %v570 = vmul.f32 %v437, %v437
      %v571 = vmul.f32 %v438, %v438
      %v572 = vmul.f32 %v439, %v439
      %v573 = vmul.f32 %v440, %v440
      %v574 = vmul.f32 %v441, %v441
      %v575 = vmul.f32 %v442, %v442
      %v576 = vmul.f32 %v443, %v443
      %v577 = vmul.f32 %v444, %v444
      %v578 = vmul.f32 %v445, %v445
      %v579 = vmul.f32 %v446, %v446
      %v580 = vmul.f32 %v447, %v447
      %v581 = vmul.f32 %v448, %v448
      %v582 = vmul.f32 %v449, %v449
      %v583 = vmul.f32 %v450, %v450
      %v584 = vmul.f32 %v451, %v451
      %v585 = vmul.f32 %v452, %v452
      %v586 = vmul.f32 %v453, %v453
      %v587 = vmul.f32 %v454, %v454
      %v588 = vmul.f32 %v455, %v455
      %v589 = vmul.f32 %v456, %v456
      %v590 = vmul.f32 %v457, %v457
      %v591 = vmul.f32 %v458, %v458
      %v592 = vmul.f32 %v459, %v459
      %v593 = vmul.f32 %v460, %v460
      %v594 = vmul.f32 %v461, %v461
      %v595 = vmul.f32 %v462, %v462
      %v596 = vmul.f32 %v463, %v463
      %v597 = vmul.f32 %v464, %v464
      %v598 = vmul.f32 %v465, %v465
      %v599 = vmul.f32 %v466, %v466
      %v600 = vmul.f32 %v467, %v467
      %v601 = vmul.f32 %v468, %v468
      %s602 = smul.f32 %s276, %s276
      %v603 = vstv %s602
      %v604 = vadd.f32 %v538, %v603
      %v605 = vadd.f32 %v539, %v603
      %v606 = vadd.f32 %v540, %v603
      %v607 = vadd.f32 %v541, %v603
      %v608 = vadd.f32 %v542, %v603
      %v609 = vadd.f32 %v543, %v603
      %v610 = vadd.f32 %v544, %v603
      %v611 = vadd.f32 %v545, %v603
      %v612 = vadd.f32 %v546, %v603
      %v613 = vadd.f32 %v547, %v603
      %v614 = vadd.f32 %v548, %v603
      %v615 = vadd.f32 %v549, %v603
      %v616 = vadd.f32 %v550, %v603
      %v617 = vadd.f32 %v551, %v603
      %v618 = vadd.f32 %v552, %v603
      %v619 = vadd.f32 %v553, %v603
      %v620 = vadd.f32 %v554, %v603
      %v621 = vadd.f32 %v555, %v603
      %v622 = vadd.f32 %v556, %v603
      %v623 = vadd.f32 %v557, %v603
      %v624 = vadd.f32 %v558, %v603
      %v625 = vadd.f32 %v559, %v603
      %v626 = vadd.f32 %v560, %v603
      %v627 = vadd.f32 %v561, %v603
      %v628 = vadd.f32 %v562, %v603
      %v629 = vadd.f32 %v563, %v603
      %v630 = vadd.f32 %v564, %v603
      %v631 = vadd.f32 %v565, %v603
      %v632 = vadd.f32 %v566, %v603
      %v633 = vadd.f32 %v567, %v603
      %v634 = vadd.f32 %v568, %v603
      %v635 = vadd.f32 %v569, %v603
      %v636 = vadd.f32 %v570, %v603
      %v637 = vadd.f32 %v571, %v603
      %v638 = vadd.f32 %v572, %v603
      %v639 = vadd.f32 %v573, %v603
      %v640 = vadd.f32 %v574, %v603
      %v641 = vadd.f32 %v575, %v603
      %v642 = vadd.f32 %v576, %v603
      %v643 = vadd.f32 %v577, %v603
      %v644 = vadd.f32 %v578, %v603
      %v645 = vadd.f32 %v579, %v603
      %v646 = vadd.f32 %v580, %v603
      %v647 = vadd.f32 %v581, %v603
      %v648 = vadd.f32 %v582, %v603
      %v649 = vadd.f32 %v583, %v603
      %v650 = vadd.f32 %v584, %v603
      %v651 = vadd.f32 %v585, %v603
      %v652 = vadd.f32 %v586, %v603
      %v653 = vadd.f32 %v587, %v603
      %v654 = vadd.f32 %v588, %v603
      %v655 = vadd.f32 %v589, %v603
      %v656 = vadd.f32 %v590, %v603
      %v657 = vadd.f32 %v591, %v603
      %v658 = vadd.f32 %v592, %v603
      %v659 = vadd.f32 %v593, %v603
      %v660 = vadd.f32 %v594, %v603
      %v661 = vadd.f32 %v595, %v603
      %v662 = vadd.f32 %v596, %v603
      %v663 = vadd.f32 %v597, %v603
      %v664 = vadd.f32 %v598, %v603
      %v665 = vadd.f32 %v599, %v603
      %v666 = vadd.f32 %v600, %v603
      %v667 = vadd.f32 %v601, %v603
      %v668 = vstv %s537
      %v669 = vmul.f32 %v604, %v668
      %v670 = vmul.f32 %v605, %v668
      %v671 = vmul.f32 %v606, %v668
      %v672 = vmul.f32 %v607, %v668
      %v673 = vmul.f32 %v608, %v668
      %v674 = vmul.f32 %v609, %v668
      %v675 = vmul.f32 %v610, %v668
      %v676 = vmul.f32 %v611, %v668
      %v677 = vmul.f32 %v612, %v668
      %v678 = vmul.f32 %v613, %v668
      %v679 = vmul.f32 %v614, %v668
      %v680 = vmul.f32 %v615, %v668
      %v681 = vmul.f32 %v616, %v668
      %v682 = vmul.f32 %v617, %v668
      %v683 = vmul.f32 %v618, %v668
      %v684 = vmul.f32 %v619, %v668
      %v685 = vmul.f32 %v620, %v668
      %v686 = vmul.f32 %v621, %v668
      %v687 = vmul.f32 %v622, %v668
      %v688 = vmul.f32 %v623, %v668
      %v689 = vmul.f32 %v624, %v668
      %v690 = vmul.f32 %v625, %v668
      %v691 = vmul.f32 %v626, %v668
      %v692 = vmul.f32 %v627, %v668
      %v693 = vmul.f32 %v628, %v668
      %v694 = vmul.f32 %v629, %v668
      %v695 = vmul.f32 %v630, %v668
      %v696 = vmul.f32 %v631, %v668
      %v697 = vmul.f32 %v632, %v668
      %v698 = vmul.f32 %v633, %v668
      %v699 = vmul.f32 %v634, %v668
      %v700 = vmul.f32 %v635, %v668
      %v701 = vmul.f32 %v636, %v668
      %v702 = vmul.f32 %v637, %v668
      %v703 = vmul.f32 %v638, %v668
      %v704 = vmul.f32 %v639, %v668
      %v705 = vmul.f32 %v640, %v668
      %v706 = vmul.f32 %v641, %v668
      %v707 = vmul.f32 %v642, %v668
      %v708 = vmul.f32 %v643, %v668
      %v709 = vmul.f32 %v644, %v668
      %v710 = vmul.f32 %v645, %v668
      %v711 = vmul.f32 %v646, %v668
      %v712 = vmul.f32 %v647, %v668
      %v713 = vmul.f32 %v648, %v668
      %v714 = vmul.f32 %v649, %v668
      %v715 = vmul.f32 %v650, %v668
      %v716 = vmul.f32 %v651, %v668
      %v717 = vmul.f32 %v652, %v668
      %v718 = vmul.f32 %v653, %v668
      %v719 = vmul.f32 %v654, %v668
      %v720 = vmul.f32 %v655, %v668
      %v721 = vmul.f32 %v656, %v668
      %v722 = vmul.f32 %v657, %v668
      %v723 = vmul.f32 %v658, %v668
      %v724 = vmul.f32 %v659, %v668
      %v725 = vmul.f32 %v660, %v668
      %v726 = vmul.f32 %v661, %v668
      %v727 = vmul.f32 %v662, %v668
      %v728 = vmul.f32 %v663, %v668
      %v729 = vmul.f32 %v664, %v668
      %v730 = vmul.f32 %v665, %v668
      %v731 = vmul.f32 %v666, %v668
      %v732 = vmul.f32 %v667, %v668
      %v733 = vstv %s276
      %vm734 = vcmp.ge.f32.partialorder %v469, %v733
      %vm735 = vcmp.ge.f32.partialorder %v470, %v733
      %vm736 = vcmp.ge.f32.partialorder %v471, %v733
      %vm737 = vcmp.ge.f32.partialorder %v472, %v733
      %vm738 = vcmp.ge.f32.partialorder %v473, %v733
      %vm739 = vcmp.ge.f32.partialorder %v474, %v733
      %vm740 = vcmp.ge.f32.partialorder %v475, %v733
      %vm741 = vcmp.ge.f32.partialorder %v476, %v733
      %vm742 = vcmp.ge.f32.partialorder %v477, %v733
      %vm743 = vcmp.ge.f32.partialorder %v478, %v733
      %vm744 = vcmp.ge.f32.partialorder %v479, %v733
      %vm745 = vcmp.ge.f32.partialorder %v480, %v733
      %vm746 = vcmp.ge.f32.partialorder %v481, %v733
      %vm747 = vcmp.ge.f32.partialorder %v482, %v733
      %vm748 = vcmp.ge.f32.partialorder %v483, %v733
      %vm749 = vcmp.ge.f32.partialorder %v484, %v733
      %vm750 = vcmp.ge.f32.partialorder %v485, %v733
      %vm751 = vcmp.ge.f32.partialorder %v486, %v733
      %vm752 = vcmp.ge.f32.partialorder %v487, %v733
      %vm753 = vcmp.ge.f32.partialorder %v488, %v733
      %vm754 = vcmp.ge.f32.partialorder %v489, %v733
      %vm755 = vcmp.ge.f32.partialorder %v490, %v733
      %vm756 = vcmp.ge.f32.partialorder %v491, %v733
      %vm757 = vcmp.ge.f32.partialorder %v492, %v733
      %vm758 = vcmp.ge.f32.partialorder %v493, %v733
      %vm759 = vcmp.ge.f32.partialorder %v494, %v733
      %vm760 = vcmp.ge.f32.partialorder %v495, %v733
      %vm761 = vcmp.ge.f32.partialorder %v496, %v733
      %vm762 = vcmp.ge.f32.partialorder %v497, %v733
      %vm763 = vcmp.ge.f32.partialorder %v498, %v733
      %vm764 = vcmp.ge.f32.partialorder %v499, %v733
      %vm765 = vcmp.ge.f32.partialorder %v500, %v733
      %vm766 = vcmp.ge.f32.partialorder %v501, %v733
      %vm767 = vcmp.ge.f32.partialorder %v502, %v733
      %vm768 = vcmp.ge.f32.partialorder %v503, %v733
      %vm769 = vcmp.ge.f32.partialorder %v504, %v733
      %vm770 = vcmp.ge.f32.partialorder %v505, %v733
      %vm771 = vcmp.ge.f32.partialorder %v506, %v733
      %vm772 = vcmp.ge.f32.partialorder %v507, %v733
      %vm773 = vcmp.ge.f32.partialorder %v508, %v733
      %vm774 = vcmp.ge.f32.partialorder %v509, %v733
      %vm775 = vcmp.ge.f32.partialorder %v510, %v733
      %vm776 = vcmp.ge.f32.partialorder %v511, %v733
      %vm777 = vcmp.ge.f32.partialorder %v512, %v733
      %vm778 = vcmp.ge.f32.partialorder %v513, %v733
      %vm779 = vcmp.ge.f32.partialorder %v514, %v733
      %vm780 = vcmp.ge.f32.partialorder %v515, %v733
      %vm781 = vcmp.ge.f32.partialorder %v516, %v733
      %vm782 = vcmp.ge.f32.partialorder %v517, %v733
      %vm783 = vcmp.ge.f32.partialorder %v518, %v733
      %vm784 = vcmp.ge.f32.partialorder %v519, %v733
      %vm785 = vcmp.ge.f32.partialorder %v520, %v733
      %vm786 = vcmp.ge.f32.partialorder %v521, %v733
      %vm787 = vcmp.ge.f32.partialorder %v522, %v733
      %vm788 = vcmp.ge.f32.partialorder %v523, %v733
      %vm789 = vcmp.ge.f32.partialorder %v524, %v733
      %vm790 = vcmp.ge.f32.partialorder %v525, %v733
      %vm791 = vcmp.ge.f32.partialorder %v526, %v733
      %vm792 = vcmp.ge.f32.partialorder %v527, %v733
      %vm793 = vcmp.ge.f32.partialorder %v528, %v733
      %vm794 = vcmp.ge.f32.partialorder %v529, %v733
      %vm795 = vcmp.ge.f32.partialorder %v530, %v733
      %vm796 = vcmp.ge.f32.partialorder %v531, %v733
      %vm797 = vcmp.ge.f32.partialorder %v532, %v733
      %v798 = vsel %vm734, %v469, %v669
      %v799 = vsel %vm735, %v470, %v670
      %v800 = vsel %vm736, %v471, %v671
      %v801 = vsel %vm737, %v472, %v672
      %v802 = vsel %vm738, %v473, %v673
      %v803 = vsel %vm739, %v474, %v674
      %v804 = vsel %vm740, %v475, %v675
      %v805 = vsel %vm741, %v476, %v676
      %v806 = vsel %vm742, %v477, %v677
      %v807 = vsel %vm743, %v478, %v678
      %v808 = vsel %vm744, %v479, %v679
      %v809 = vsel %vm745, %v480, %v680
      %v810 = vsel %vm746, %v481, %v681
      %v811 = vsel %vm747, %v482, %v682
      %v812 = vsel %vm748, %v483, %v683
      %v813 = vsel %vm749, %v484, %v684
      %v814 = vsel %vm750, %v485, %v685
      %v815 = vsel %vm751, %v486, %v686
      %v816 = vsel %vm752, %v487, %v687
      %v817 = vsel %vm753, %v488, %v688
      %v818 = vsel %vm754, %v489, %v689
      %v819 = vsel %vm755, %v490, %v690
      %v820 = vsel %vm756, %v491, %v691
      %v821 = vsel %vm757, %v492, %v692
      %v822 = vsel %vm758, %v493, %v693
      %v823 = vsel %vm759, %v494, %v694
      %v824 = vsel %vm760, %v495, %v695
      %v825 = vsel %vm761, %v496, %v696
      %v826 = vsel %vm762, %v497, %v697
      %v827 = vsel %vm763, %v498, %v698
      %v828 = vsel %vm764, %v499, %v699
      %v829 = vsel %vm765, %v500, %v700
      %v830 = vsel %vm766, %v501, %v701
      %v831 = vsel %vm767, %v502, %v702
      %v832 = vsel %vm768, %v503, %v703
      %v833 = vsel %vm769, %v504, %v704
      %v834 = vsel %vm770, %v505, %v705
      %v835 = vsel %vm771, %v506, %v706
      %v836 = vsel %vm772, %v507, %v707
      %v837 = vsel %vm773, %v508, %v708
      %v838 = vsel %vm774, %v509, %v709
      %v839 = vsel %vm775, %v510, %v710
      %v840 = vsel %vm776, %v511, %v711
      %v841 = vsel %vm777, %v512, %v712
      %v842 = vsel %vm778, %v513, %v713
      %v843 = vsel %vm779, %v514, %v714
      %v844 = vsel %vm780, %v515, %v715
      %v845 = vsel %vm781, %v516, %v716
      %v846 = vsel %vm782, %v517, %v717
      %v847 = vsel %vm783, %v518, %v718
      %v848 = vsel %vm784, %v519, %v719
      %v849 = vsel %vm785, %v520, %v720
      %v850 = vsel %vm786, %v521, %v721
      %v851 = vsel %vm787, %v522, %v722
      %v852 = vsel %vm788, %v523, %v723
      %v853 = vsel %vm789, %v524, %v724
      %v854 = vsel %vm790, %v525, %v725
      %v855 = vsel %vm791, %v526, %v726
      %v856 = vsel %vm792, %v527, %v727
      %v857 = vsel %vm793, %v528, %v728
      %v858 = vsel %vm794, %v529, %v729
      %v859 = vsel %vm795, %v530, %v730
      %v860 = vsel %vm796, %v531, %v731
      %v861 = vsel %vm797, %v532, %v732
      %v862 = vld [vmem:[%s264] sm:$0xff]
      %v863 = vld [vmem:[%s264 + $0x8] sm:$0xff]
      %v864 = vld [vmem:[%s264 + $0x10] sm:$0xff]
      %v865 = vld [vmem:[%s264 + $0x18] sm:$0xff]
      %v866 = vld [vmem:[%s264 + $0x20] sm:$0xff]
      %v867 = vld [vmem:[%s264 + $0x28] sm:$0xff]
      %v868 = vld [vmem:[%s264 + $0x30] sm:$0xff]
      %v869 = vld [vmem:[%s264 + $0x38] sm:$0xff]
      %v870 = vld [vmem:[%s264 + $0x40] sm:$0xff]
      %v871 = vld [vmem:[%s264 + $0x48] sm:$0xff]
      %v872 = vld [vmem:[%s264 + $0x50] sm:$0xff]
      %v873 = vld [vmem:[%s264 + $0x58] sm:$0xff]
      %v874 = vld [vmem:[%s264 + $0x60] sm:$0xff]
      %v875 = vld [vmem:[%s264 + $0x68] sm:$0xff]
      %v876 = vld [vmem:[%s264 + $0x70] sm:$0xff]
      %v877 = vld [vmem:[%s264 + $0x78] sm:$0xff]
      %v878 = vld [vmem:[%s264 + $0x80] sm:$0xff]
      %v879 = vld [vmem:[%s264 + $0x88] sm:$0xff]
      %v880 = vld [vmem:[%s264 + $0x90] sm:$0xff]
      %v881 = vld [vmem:[%s264 + $0x98] sm:$0xff]
      %v882 = vld [vmem:[%s264 + $0xa0] sm:$0xff]
      %v883 = vld [vmem:[%s264 + $0xa8] sm:$0xff]
      %v884 = vld [vmem:[%s264 + $0xb0] sm:$0xff]
      %v885 = vld [vmem:[%s264 + $0xb8] sm:$0xff]
      %v886 = vld [vmem:[%s264 + $0xc0] sm:$0xff]
      %v887 = vld [vmem:[%s264 + $0xc8] sm:$0xff]
      %v888 = vld [vmem:[%s264 + $0xd0] sm:$0xff]
      %v889 = vld [vmem:[%s264 + $0xd8] sm:$0xff]
      %v890 = vld [vmem:[%s264 + $0xe0] sm:$0xff]
      %v891 = vld [vmem:[%s264 + $0xe8] sm:$0xff]
      %v892 = vld [vmem:[%s264 + $0xf0] sm:$0xff]
      %v893 = vld [vmem:[%s264 + $0xf8] sm:$0xff]
      %v894 = vld [vmem:[%s264 + $0x100] sm:$0xff]
      %v895 = vld [vmem:[%s264 + $0x108] sm:$0xff]
      %v896 = vld [vmem:[%s264 + $0x110] sm:$0xff]
      %v897 = vld [vmem:[%s264 + $0x118] sm:$0xff]
      %v898 = vld [vmem:[%s264 + $0x120] sm:$0xff]
      %v899 = vld [vmem:[%s264 + $0x128] sm:$0xff]
      %v900 = vld [vmem:[%s264 + $0x130] sm:$0xff]
      %v901 = vld [vmem:[%s264 + $0x138] sm:$0xff]
      %v902 = vld [vmem:[%s264 + $0x140] sm:$0xff]
      %v903 = vld [vmem:[%s264 + $0x148] sm:$0xff]
      %v904 = vld [vmem:[%s264 + $0x150] sm:$0xff]
      %v905 = vld [vmem:[%s264 + $0x158] sm:$0xff]
      %v906 = vld [vmem:[%s264 + $0x160] sm:$0xff]
      %v907 = vld [vmem:[%s264 + $0x168] sm:$0xff]
      %v908 = vld [vmem:[%s264 + $0x170] sm:$0xff]
      %v909 = vld [vmem:[%s264 + $0x178] sm:$0xff]
      %v910 = vld [vmem:[%s264 + $0x180] sm:$0xff]
      %v911 = vld [vmem:[%s264 + $0x188] sm:$0xff]
      %v912 = vld [vmem:[%s264 + $0x190] sm:$0xff]
      %v913 = vld [vmem:[%s264 + $0x198] sm:$0xff]
      %v914 = vld [vmem:[%s264 + $0x1a0] sm:$0xff]
      %v915 = vld [vmem:[%s264 + $0x1a8] sm:$0xff]
      %v916 = vld [vmem:[%s264 + $0x1b0] sm:$0xff]
      %v917 = vld [vmem:[%s264 + $0x1b8] sm:$0xff]
      %v918 = vld [vmem:[%s264 + $0x1c0] sm:$0xff]
      %v919 = vld [vmem:[%s264 + $0x1c8] sm:$0xff]
      %v920 = vld [vmem:[%s264 + $0x1d0] sm:$0xff]
      %v921 = vld [vmem:[%s264 + $0x1d8] sm:$0xff]
      %v922 = vld [vmem:[%s264 + $0x1e0] sm:$0xff]
      %v923 = vld [vmem:[%s264 + $0x1e8] sm:$0xff]
      %v924 = vld [vmem:[%s264 + $0x1f0] sm:$0xff]
      %v925 = vld [vmem:[%s264 + $0x1f8] sm:$0xff]
      %v926 = vsub.f32 0.0, %v862
      %v927 = vsub.f32 0.0, %v863
      %v928 = vsub.f32 0.0, %v864
      %v929 = vsub.f32 0.0, %v865
      %v930 = vsub.f32 0.0, %v866
      %v931 = vsub.f32 0.0, %v867
      %v932 = vsub.f32 0.0, %v868
      %v933 = vsub.f32 0.0, %v869
      %v934 = vsub.f32 0.0, %v870
      %v935 = vsub.f32 0.0, %v871
      %v936 = vsub.f32 0.0, %v872
      %v937 = vsub.f32 0.0, %v873
      %v938 = vsub.f32 0.0, %v874
      %v939 = vsub.f32 0.0, %v875
      %v940 = vsub.f32 0.0, %v876
      %v941 = vsub.f32 0.0, %v877
      %v942 = vsub.f32 0.0, %v878
      %v943 = vsub.f32 0.0, %v879
      %v944 = vsub.f32 0.0, %v880
      %v945 = vsub.f32 0.0, %v881
      %v946 = vsub.f32 0.0, %v882
      %v947 = vsub.f32 0.0, %v883
      %v948 = vsub.f32 0.0, %v884
      %v949 = vsub.f32 0.0, %v885
      %v950 = vsub.f32 0.0, %v886
      %v951 = vsub.f32 0.0, %v887
      %v952 = vsub.f32 0.0, %v888
      %v953 = vsub.f32 0.0, %v889
      %v954 = vsub.f32 0.0, %v890
      %v955 = vsub.f32 0.0, %v891
      %v956 = vsub.f32 0.0, %v892
      %v957 = vsub.f32 0.0, %v893
      %v958 = vsub.f32 0.0, %v894
      %v959 = vsub.f32 0.0, %v895
      %v960 = vsub.f32 0.0, %v896
      %v961 = vsub.f32 0.0, %v897
      %v962 = vsub.f32 0.0, %v898
      %v963 = vsub.f32 0.0, %v899
      %v964 = vsub.f32 0.0, %v900
      %v965 = vsub.f32 0.0, %v901
      %v966 = vsub.f32 0.0, %v902
      %v967 = vsub.f32 0.0, %v903
      %v968 = vsub.f32 0.0, %v904
      %v969 = vsub.f32 0.0, %v905
      %v970 = vsub.f32 0.0, %v906
      %v971 = vsub.f32 0.0, %v907
      %v972 = vsub.f32 0.0, %v908
      %v973 = vsub.f32 0.0, %v909
      %v974 = vsub.f32 0.0, %v910
      %v975 = vsub.f32 0.0, %v911
      %v976 = vsub.f32 0.0, %v912
      %v977 = vsub.f32 0.0, %v913
      %v978 = vsub.f32 0.0, %v914
      %v979 = vsub.f32 0.0, %v915
      %v980 = vsub.f32 0.0, %v916
      %v981 = vsub.f32 0.0, %v917
      %v982 = vsub.f32 0.0, %v918
      %v983 = vsub.f32 0.0, %v919
      %v984 = vsub.f32 0.0, %v920
      %v985 = vsub.f32 0.0, %v921
      %v986 = vsub.f32 0.0, %v922
      %v987 = vsub.f32 0.0, %v923
      %v988 = vsub.f32 0.0, %v924
      %v989 = vsub.f32 0.0, %v925
      %v990 = vmul.f32 %v926, 1.442695
      %v991 = vpow.pop %v990
      %v992 = vmul.f32 %v927, 1.442695
      %v993 = vpow.pop %v992
      %v994 = vmul.f32 %v928, 1.442695
      %v995 = vpow.pop %v994
      %v996 = vmul.f32 %v929, 1.442695
      %v997 = vpow.pop %v996
      %v998 = vmul.f32 %v930, 1.442695
      %v999 = vpow.pop %v998
      %v1000 = vmul.f32 %v931, 1.442695
      %v1001 = vpow.pop %v1000
      %v1002 = vmul.f32 %v932, 1.442695
      %v1003 = vpow.pop %v1002
      %v1004 = vmul.f32 %v933, 1.442695
      %v1005 = vpow.pop %v1004
      %v1006 = vmul.f32 %v934, 1.442695
      %v1007 = vpow.pop %v1006
      %v1008 = vmul.f32 %v935, 1.442695
      %v1009 = vpow.pop %v1008
      %v1010 = vmul.f32 %v936, 1.442695
      %v1011 = vpow.pop %v1010
      %v1012 = vmul.f32 %v937, 1.442695
      %v1013 = vpow.pop %v1012
      %v1014 = vmul.f32 %v938, 1.442695
      %v1015 = vpow.pop %v1014
      %v1016 = vmul.f32 %v939, 1.442695
      %v1017 = vpow.pop %v1016
      %v1018 = vmul.f32 %v940, 1.442695
      %v1019 = vpow.pop %v1018
      %v1020 = vmul.f32 %v941, 1.442695
      %v1021 = vpow.pop %v1020
      %v1022 = vmul.f32 %v942, 1.442695
      %v1023 = vpow.pop %v1022
      %v1024 = vmul.f32 %v943, 1.442695
      %v1025 = vpow.pop %v1024
      %v1026 = vmul.f32 %v944, 1.442695
      %v1027 = vpow.pop %v1026
      %v1028 = vmul.f32 %v945, 1.442695
      %v1029 = vpow.pop %v1028
      %v1030 = vmul.f32 %v946, 1.442695
      %v1031 = vpow.pop %v1030
      %v1032 = vmul.f32 %v947, 1.442695
      %v1033 = vpow.pop %v1032
      %v1034 = vmul.f32 %v948, 1.442695
      %v1035 = vpow.pop %v1034
      %v1036 = vmul.f32 %v949, 1.442695
      %v1037 = vpow.pop %v1036
      %v1038 = vmul.f32 %v950, 1.442695
      %v1039 = vpow.pop %v1038
      %v1040 = vmul.f32 %v951, 1.442695
      %v1041 = vpow.pop %v1040
      %v1042 = vmul.f32 %v952, 1.442695
      %v1043 = vpow.pop %v1042
      %v1044 = vmul.f32 %v953, 1.442695
      %v1045 = vpow.pop %v1044
      %v1046 = vmul.f32 %v954, 1.442695
      %v1047 = vpow.pop %v1046
      %v1048 = vmul.f32 %v955, 1.442695
      %v1049 = vpow.pop %v1048
      %v1050 = vmul.f32 %v956, 1.442695
      %v1051 = vpow.pop %v1050
      %v1052 = vmul.f32 %v957, 1.442695
      %v1053 = vpow.pop %v1052
      %v1054 = vmul.f32 %v958, 1.442695
      %v1055 = vpow.pop %v1054
      %v1056 = vmul.f32 %v959, 1.442695
      %v1057 = vpow.pop %v1056
      %v1058 = vmul.f32 %v960, 1.442695
      %v1059 = vpow.pop %v1058
      %v1060 = vmul.f32 %v961, 1.442695
      %v1061 = vpow.pop %v1060
      %v1062 = vmul.f32 %v962, 1.442695
      %v1063 = vpow.pop %v1062
      %v1064 = vmul.f32 %v963, 1.442695
      %v1065 = vpow.pop %v1064
      %v1066 = vmul.f32 %v964, 1.442695
      %v1067 = vpow.pop %v1066
      %v1068 = vmul.f32 %v965, 1.442695
      %v1069 = vpow.pop %v1068
      %v1070 = vmul.f32 %v966, 1.442695
      %v1071 = vpow.pop %v1070
      %v1072 = vmul.f32 %v967, 1.442695
      %v1073 = vpow.pop %v1072
      %v1074 = vmul.f32 %v968, 1.442695
      %v1075 = vpow.pop %v1074
      %v1076 = vmul.f32 %v969, 1.442695
      %v1077 = vpow.pop %v1076
      %v1078 = vmul.f32 %v970, 1.442695
      %v1079 = vpow.pop %v1078
      %v1080 = vmul.f32 %v971, 1.442695
      %v1081 = vpow.pop %v1080
      %v1082 = vmul.f32 %v972, 1.442695
      %v1083 = vpow.pop %v1082
      %v1084 = vmul.f32 %v973, 1.442695
      %v1085 = vpow.pop %v1084
      %v1086 = vmul.f32 %v974, 1.442695
      %v1087 = vpow.pop %v1086
      %v1088 = vmul.f32 %v975, 1.442695
      %v1089 = vpow.pop %v1088
      %v1090 = vmul.f32 %v976, 1.442695
      %v1091 = vpow.pop %v1090
      %v1092 = vmul.f32 %v977, 1.442695
      %v1093 = vpow.pop %v1092
      %v1094 = vmul.f32 %v978, 1.442695
      %v1095 = vpow.pop %v1094
      %v1096 = vmul.f32 %v979, 1.442695
      %v1097 = vpow.pop %v1096
      %v1098 = vmul.f32 %v980, 1.442695
      %v1099 = vpow.pop %v1098
      %v1100 = vmul.f32 %v981, 1.442695
      %v1101 = vpow.pop %v1100
      %v1102 = vmul.f32 %v982, 1.442695
      %v1103 = vpow.pop %v1102
      %v1104 = vmul.f32 %v983, 1.442695
      %v1105 = vpow.pop %v1104
      %v1106 = vmul.f32 %v984, 1.442695
      %v1107 = vpow.pop %v1106
      %v1108 = vmul.f32 %v985, 1.442695
      %v1109 = vpow.pop %v1108
      %v1110 = vmul.f32 %v986, 1.442695
      %v1111 = vpow.pop %v1110
      %v1112 = vmul.f32 %v987, 1.442695
      %v1113 = vpow.pop %v1112
      %v1114 = vmul.f32 %v988, 1.442695
      %v1115 = vpow.pop %v1114
      %v1116 = vmul.f32 %v989, 1.442695
      %v1117 = vpow.pop %v1116
      %v1118 = vmul.f32 %v991, 3.8221624e-06
      %v1119 = vmul.f32 %v993, 3.8221624e-06
      %v1120 = vmul.f32 %v995, 3.8221624e-06
      %v1121 = vmul.f32 %v997, 3.8221624e-06
      %v1122 = vmul.f32 %v999, 3.8221624e-06
      %v1123 = vmul.f32 %v1001, 3.8221624e-06
      %v1124 = vmul.f32 %v1003, 3.8221624e-06
      %v1125 = vmul.f32 %v1005, 3.8221624e-06
      %v1126 = vmul.f32 %v1007, 3.8221624e-06
      %v1127 = vmul.f32 %v1009, 3.8221624e-06
      %v1128 = vmul.f32 %v1011, 3.8221624e-06
      %v1129 = vmul.f32 %v1013, 3.8221624e-06
      %v1130 = vmul.f32 %v1015, 3.8221624e-06
      %v1131 = vmul.f32 %v1017, 3.8221624e-06
      %v1132 = vmul.f32 %v1019, 3.8221624e-06
      %v1133 = vmul.f32 %v1021, 3.8221624e-06
      %v1134 = vmul.f32 %v1023, 3.8221624e-06
      %v1135 = vmul.f32 %v1025, 3.8221624e-06
      %v1136 = vmul.f32 %v1027, 3.8221624e-06
      %v1137 = vmul.f32 %v1029, 3.8221624e-06
      %v1138 = vmul.f32 %v1031, 3.8221624e-06
      %v1139 = vmul.f32 %v1033, 3.8221624e-06
      %v1140 = vmul.f32 %v1035, 3.8221624e-06
      %v1141 = vmul.f32 %v1037, 3.8221624e-06
      %v1142 = vmul.f32 %v1039, 3.8221624e-06
      %v1143 = vmul.f32 %v1041, 3.8221624e-06
      %v1144 = vmul.f32 %v1043, 3.8221624e-06
      %v1145 = vmul.f32 %v1045, 3.8221624e-06
      %v1146 = vmul.f32 %v1047, 3.8221624e-06
      %v1147 = vmul.f32 %v1049, 3.8221624e-06
      %v1148 = vmul.f32 %v1051, 3.8221624e-06
      %v1149 = vmul.f32 %v1053, 3.8221624e-06
      %v1150 = vmul.f32 %v1055, 3.8221624e-06
      %v1151 = vmul.f32 %v1057, 3.8221624e-06
      %v1152 = vmul.f32 %v1059, 3.8221624e-06
      %v1153 = vmul.f32 %v1061, 3.8221624e-06
      %v1154 = vmul.f32 %v1063, 3.8221624e-06
      %v1155 = vmul.f32 %v1065, 3.8221624e-06
      %v1156 = vmul.f32 %v1067, 3.8221624e-06
      %v1157 = vmul.f32 %v1069, 3.8221624e-06
      %v1158 = vmul.f32 %v1071, 3.8221624e-06
      %v1159 = vmul.f32 %v1073, 3.8221624e-06
      %v1160 = vmul.f32 %v1075, 3.8221624e-06
      %v1161 = vmul.f32 %v1077, 3.8221624e-06
      %v1162 = vmul.f32 %v1079, 3.8221624e-06
      %v1163 = vmul.f32 %v1081, 3.8221624e-06
      %v1164 = vmul.f32 %v1083, 3.8221624e-06
      %v1165 = vmul.f32 %v1085, 3.8221624e-06
      %v1166 = vmul.f32 %v1087, 3.8221624e-06
      %v1167 = vmul.f32 %v1089, 3.8221624e-06
      %v1168 = vmul.f32 %v1091, 3.8221624e-06
      %v1169 = vmul.f32 %v1093, 3.8221624e-06
      %v1170 = vmul.f32 %v1095, 3.8221624e-06
      %v1171 = vmul.f32 %v1097, 3.8221624e-06
      %v1172 = vmul.f32 %v1099, 3.8221624e-06
      %v1173 = vmul.f32 %v1101, 3.8221624e-06
      %v1174 = vmul.f32 %v1103, 3.8221624e-06
      %v1175 = vmul.f32 %v1105, 3.8221624e-06
      %v1176 = vmul.f32 %v1107, 3.8221624e-06
      %v1177 = vmul.f32 %v1109, 3.8221624e-06
      %v1178 = vmul.f32 %v1111, 3.8221624e-06
      %v1179 = vmul.f32 %v1113, 3.8221624e-06
      %v1180 = vmul.f32 %v1115, 3.8221624e-06
      %v1181 = vmul.f32 %v1117, 3.8221624e-06
      %v1182 = vld [vmem:[%s271] sm:$0xff]
      %v1183 = vld [vmem:[%s271 + $0x8] sm:$0xff]
      %v1184 = vld [vmem:[%s271 + $0x10] sm:$0xff]
      %v1185 = vld [vmem:[%s271 + $0x18] sm:$0xff]
      %v1186 = vld [vmem:[%s271 + $0x20] sm:$0xff]
      %v1187 = vld [vmem:[%s271 + $0x28] sm:$0xff]
      %v1188 = vld [vmem:[%s271 + $0x30] sm:$0xff]
      %v1189 = vld [vmem:[%s271 + $0x38] sm:$0xff]
      %v1190 = vld [vmem:[%s271 + $0x40] sm:$0xff]
      %v1191 = vld [vmem:[%s271 + $0x48] sm:$0xff]
      %v1192 = vld [vmem:[%s271 + $0x50] sm:$0xff]
      %v1193 = vld [vmem:[%s271 + $0x58] sm:$0xff]
      %v1194 = vld [vmem:[%s271 + $0x60] sm:$0xff]
      %v1195 = vld [vmem:[%s271 + $0x68] sm:$0xff]
      %v1196 = vld [vmem:[%s271 + $0x70] sm:$0xff]
      %v1197 = vld [vmem:[%s271 + $0x78] sm:$0xff]
      %v1198 = vld [vmem:[%s271 + $0x80] sm:$0xff]
      %v1199 = vld [vmem:[%s271 + $0x88] sm:$0xff]
      %v1200 = vld [vmem:[%s271 + $0x90] sm:$0xff]
      %v1201 = vld [vmem:[%s271 + $0x98] sm:$0xff]
      %v1202 = vld [vmem:[%s271 + $0xa0] sm:$0xff]
      %v1203 = vld [vmem:[%s271 + $0xa8] sm:$0xff]
      %v1204 = vld [vmem:[%s271 + $0xb0] sm:$0xff]
      %v1205 = vld [vmem:[%s271 + $0xb8] sm:$0xff]
      %v1206 = vld [vmem:[%s271 + $0xc0] sm:$0xff]
      %v1207 = vld [vmem:[%s271 + $0xc8] sm:$0xff]
      %v1208 = vld [vmem:[%s271 + $0xd0] sm:$0xff]
      %v1209 = vld [vmem:[%s271 + $0xd8] sm:$0xff]
      %v1210 = vld [vmem:[%s271 + $0xe0] sm:$0xff]
      %v1211 = vld [vmem:[%s271 + $0xe8] sm:$0xff]
      %v1212 = vld [vmem:[%s271 + $0xf0] sm:$0xff]
      %v1213 = vld [vmem:[%s271 + $0xf8] sm:$0xff]
      %v1214 = vld [vmem:[%s271 + $0x100] sm:$0xff]
      %v1215 = vld [vmem:[%s271 + $0x108] sm:$0xff]
      %v1216 = vld [vmem:[%s271 + $0x110] sm:$0xff]
      %v1217 = vld [vmem:[%s271 + $0x118] sm:$0xff]
      %v1218 = vld [vmem:[%s271 + $0x120] sm:$0xff]
      %v1219 = vld [vmem:[%s271 + $0x128] sm:$0xff]
      %v1220 = vld [vmem:[%s271 + $0x130] sm:$0xff]
      %v1221 = vld [vmem:[%s271 + $0x138] sm:$0xff]
      %v1222 = vld [vmem:[%s271 + $0x140] sm:$0xff]
      %v1223 = vld [vmem:[%s271 + $0x148] sm:$0xff]
      %v1224 = vld [vmem:[%s271 + $0x150] sm:$0xff]
      %v1225 = vld [vmem:[%s271 + $0x158] sm:$0xff]
      %v1226 = vld [vmem:[%s271 + $0x160] sm:$0xff]
      %v1227 = vld [vmem:[%s271 + $0x168] sm:$0xff]
      %v1228 = vld [vmem:[%s271 + $0x170] sm:$0xff]
      %v1229 = vld [vmem:[%s271 + $0x178] sm:$0xff]
      %v1230 = vld [vmem:[%s271 + $0x180] sm:$0xff]
      %v1231 = vld [vmem:[%s271 + $0x188] sm:$0xff]
      %v1232 = vld [vmem:[%s271 + $0x190] sm:$0xff]
      %v1233 = vld [vmem:[%s271 + $0x198] sm:$0xff]
      %v1234 = vld [vmem:[%s271 + $0x1a0] sm:$0xff]
      %v1235 = vld [vmem:[%s271 + $0x1a8] sm:$0xff]
      %v1236 = vld [vmem:[%s271 + $0x1b0] sm:$0xff]
      %v1237 = vld [vmem:[%s271 + $0x1b8] sm:$0xff]
      %v1238 = vld [vmem:[%s271 + $0x1c0] sm:$0xff]
      %v1239 = vld [vmem:[%s271 + $0x1c8] sm:$0xff]
      %v1240 = vld [vmem:[%s271 + $0x1d0] sm:$0xff]
      %v1241 = vld [vmem:[%s271 + $0x1d8] sm:$0xff]
      %v1242 = vld [vmem:[%s271 + $0x1e0] sm:$0xff]
      %v1243 = vld [vmem:[%s271 + $0x1e8] sm:$0xff]
      %v1244 = vld [vmem:[%s271 + $0x1f0] sm:$0xff]
      %v1245 = vld [vmem:[%s271 + $0x1f8] sm:$0xff]
      %v1246 = vsub.f32 0.0, %v1182
      %v1247 = vsub.f32 0.0, %v1183
      %v1248 = vsub.f32 0.0, %v1184
      %v1249 = vsub.f32 0.0, %v1185
      %v1250 = vsub.f32 0.0, %v1186
      %v1251 = vsub.f32 0.0, %v1187
      %v1252 = vsub.f32 0.0, %v1188
      %v1253 = vsub.f32 0.0, %v1189
      %v1254 = vsub.f32 0.0, %v1190
      %v1255 = vsub.f32 0.0, %v1191
      %v1256 = vsub.f32 0.0, %v1192
      %v1257 = vsub.f32 0.0, %v1193
      %v1258 = vsub.f32 0.0, %v1194
      %v1259 = vsub.f32 0.0, %v1195
      %v1260 = vsub.f32 0.0, %v1196
      %v1261 = vsub.f32 0.0, %v1197
      %v1262 = vsub.f32 0.0, %v1198
      %v1263 = vsub.f32 0.0, %v1199
      %v1264 = vsub.f32 0.0, %v1200
      %v1265 = vsub.f32 0.0, %v1201
      %v1266 = vsub.f32 0.0, %v1202
      %v1267 = vsub.f32 0.0, %v1203
      %v1268 = vsub.f32 0.0, %v1204
      %v1269 = vsub.f32 0.0, %v1205
      %v1270 = vsub.f32 0.0, %v1206
      %v1271 = vsub.f32 0.0, %v1207
      %v1272 = vsub.f32 0.0, %v1208
      %v1273 = vsub.f32 0.0, %v1209
      %v1274 = vsub.f32 0.0, %v1210
      %v1275 = vsub.f32 0.0, %v1211
      %v1276 = vsub.f32 0.0, %v1212
      %v1277 = vsub.f32 0.0, %v1213
      %v1278 = vsub.f32 0.0, %v1214
      %v1279 = vsub.f32 0.0, %v1215
      %v1280 = vsub.f32 0.0, %v1216
      %v1281 = vsub.f32 0.0, %v1217
      %v1282 = vsub.f32 0.0, %v1218
      %v1283 = vsub.f32 0.0, %v1219
      %v1284 = vsub.f32 0.0, %v1220
      %v1285 = vsub.f32 0.0, %v1221
      %v1286 = vsub.f32 0.0, %v1222
      %v1287 = vsub.f32 0.0, %v1223
      %v1288 = vsub.f32 0.0, %v1224
      %v1289 = vsub.f32 0.0, %v1225
      %v1290 = vsub.f32 0.0, %v1226
      %v1291 = vsub.f32 0.0, %v1227
      %v1292 = vsub.f32 0.0, %v1228
      %v1293 = vsub.f32 0.0, %v1229
      %v1294 = vsub.f32 0.0, %v1230
      %v1295 = vsub.f32 0.0, %v1231
      %v1296 = vsub.f32 0.0, %v1232
      %v1297 = vsub.f32 0.0, %v1233
      %v1298 = vsub.f32 0.0, %v1234
      %v1299 = vsub.f32 0.0, %v1235
      %v1300 = vsub.f32 0.0, %v1236
      %v1301 = vsub.f32 0.0, %v1237
      %v1302 = vsub.f32 0.0, %v1238
      %v1303 = vsub.f32 0.0, %v1239
      %v1304 = vsub.f32 0.0, %v1240
      %v1305 = vsub.f32 0.0, %v1241
      %v1306 = vsub.f32 0.0, %v1242
      %v1307 = vsub.f32 0.0, %v1243
      %v1308 = vsub.f32 0.0, %v1244
      %v1309 = vsub.f32 0.0, %v1245
      %v1310 = vmul.f32 %v1246, 1.442695
      %v1311 = vpow.pop %v1310
      %v1312 = vmul.f32 %v1247, 1.442695
      %v1313 = vpow.pop %v1312
      %v1314 = vmul.f32 %v1248, 1.442695
      %v1315 = vpow.pop %v1314
      %v1316 = vmul.f32 %v1249, 1.442695
      %v1317 = vpow.pop %v1316
      %v1318 = vmul.f32 %v1250, 1.442695
      %v1319 = vpow.pop %v1318
      %v1320 = vmul.f32 %v1251, 1.442695
      %v1321 = vpow.pop %v1320
      %v1322 = vmul.f32 %v1252, 1.442695
      %v1323 = vpow.pop %v1322
      %v1324 = vmul.f32 %v1253, 1.442695
      %v1325 = vpow.pop %v1324
      %v1326 = vmul.f32 %v1254, 1.442695
      %v1327 = vpow.pop %v1326
      %v1328 = vmul.f32 %v1255, 1.442695
      %v1329 = vpow.pop %v1328
      %v1330 = vmul.f32 %v1256, 1.442695
      %v1331 = vpow.pop %v1330
      %v1332 = vmul.f32 %v1257, 1.442695
      %v1333 = vpow.pop %v1332
      %v1334 = vmul.f32 %v1258, 1.442695
      %v1335 = vpow.pop %v1334
      %v1336 = vmul.f32 %v1259, 1.442695
      %v1337 = vpow.pop %v1336
      %v1338 = vmul.f32 %v1260, 1.442695
      %v1339 = vpow.pop %v1338
      %v1340 = vmul.f32 %v1261, 1.442695
      %v1341 = vpow.pop %v1340
      %v1342 = vmul.f32 %v1262, 1.442695
      %v1343 = vpow.pop %v1342
      %v1344 = vmul.f32 %v1263, 1.442695
      %v1345 = vpow.pop %v1344
      %v1346 = vmul.f32 %v1264, 1.442695
      %v1347 = vpow.pop %v1346
      %v1348 = vmul.f32 %v1265, 1.442695
      %v1349 = vpow.pop %v1348
      %v1350 = vmul.f32 %v1266, 1.442695
      %v1351 = vpow.pop %v1350
      %v1352 = vmul.f32 %v1267, 1.442695
      %v1353 = vpow.pop %v1352
      %v1354 = vmul.f32 %v1268, 1.442695
      %v1355 = vpow.pop %v1354
      %v1356 = vmul.f32 %v1269, 1.442695
      %v1357 = vpow.pop %v1356
      %v1358 = vmul.f32 %v1270, 1.442695
      %v1359 = vpow.pop %v1358
      %v1360 = vmul.f32 %v1271, 1.442695
      %v1361 = vpow.pop %v1360
      %v1362 = vmul.f32 %v1272, 1.442695
      %v1363 = vpow.pop %v1362
      %v1364 = vmul.f32 %v1273, 1.442695
      %v1365 = vpow.pop %v1364
      %v1366 = vmul.f32 %v1274, 1.442695
      %v1367 = vpow.pop %v1366
      %v1368 = vmul.f32 %v1275, 1.442695
      %v1369 = vpow.pop %v1368
      %v1370 = vmul.f32 %v1276, 1.442695
      %v1371 = vpow.pop %v1370
      %v1372 = vmul.f32 %v1277, 1.442695
      %v1373 = vpow.pop %v1372
      %v1374 = vmul.f32 %v1278, 1.442695
      %v1375 = vpow.pop %v1374
      %v1376 = vmul.f32 %v1279, 1.442695
      %v1377 = vpow.pop %v1376
      %v1378 = vmul.f32 %v1280, 1.442695
      %v1379 = vpow.pop %v1378
      %v1380 = vmul.f32 %v1281, 1.442695
      %v1381 = vpow.pop %v1380
      %v1382 = vmul.f32 %v1282, 1.442695
      %v1383 = vpow.pop %v1382
      %v1384 = vmul.f32 %v1283, 1.442695
      %v1385 = vpow.pop %v1384
      %v1386 = vmul.f32 %v1284, 1.442695
      %v1387 = vpow.pop %v1386
      %v1388 = vmul.f32 %v1285, 1.442695
      %v1389 = vpow.pop %v1388
      %v1390 = vmul.f32 %v1286, 1.442695
      %v1391 = vpow.pop %v1390
      %v1392 = vmul.f32 %v1287, 1.442695
      %v1393 = vpow.pop %v1392
      %v1394 = vmul.f32 %v1288, 1.442695
      %v1395 = vpow.pop %v1394
      %v1396 = vmul.f32 %v1289, 1.442695
      %v1397 = vpow.pop %v1396
      %v1398 = vmul.f32 %v1290, 1.442695
      %v1399 = vpow.pop %v1398
      %v1400 = vmul.f32 %v1291, 1.442695
      %v1401 = vpow.pop %v1400
      %v1402 = vmul.f32 %v1292, 1.442695
      %v1403 = vpow.pop %v1402
      %v1404 = vmul.f32 %v1293, 1.442695
      %v1405 = vpow.pop %v1404
      %v1406 = vmul.f32 %v1294, 1.442695
      %v1407 = vpow.pop %v1406
      %v1408 = vmul.f32 %v1295, 1.442695
      %v1409 = vpow.pop %v1408
      %v1410 = vmul.f32 %v1296, 1.442695
      %v1411 = vpow.pop %v1410
      %v1412 = vmul.f32 %v1297, 1.442695
      %v1413 = vpow.pop %v1412
      %v1414 = vmul.f32 %v1298, 1.442695
      %v1415 = vpow.pop %v1414
      %v1416 = vmul.f32 %v1299, 1.442695
      %v1417 = vpow.pop %v1416
      %v1418 = vmul.f32 %v1300, 1.442695
      %v1419 = vpow.pop %v1418
      %v1420 = vmul.f32 %v1301, 1.442695
      %v1421 = vpow.pop %v1420
      %v1422 = vmul.f32 %v1302, 1.442695
      %v1423 = vpow.pop %v1422
      %v1424 = vmul.f32 %v1303, 1.442695
      %v1425 = vpow.pop %v1424
      %v1426 = vmul.f32 %v1304, 1.442695
      %v1427 = vpow.pop %v1426
      %v1428 = vmul.f32 %v1305, 1.442695
      %v1429 = vpow.pop %v1428
      %v1430 = vmul.f32 %v1306, 1.442695
      %v1431 = vpow.pop %v1430
      %v1432 = vmul.f32 %v1307, 1.442695
      %v1433 = vpow.pop %v1432
      %v1434 = vmul.f32 %v1308, 1.442695
      %v1435 = vpow.pop %v1434
      %v1436 = vmul.f32 %v1309, 1.442695
      %v1437 = vpow.pop %v1436
      %v1438 = vmul.f32 %v1311, 3.8221624e-06
      %v1439 = vmul.f32 %v1313, 3.8221624e-06
      %v1440 = vmul.f32 %v1315, 3.8221624e-06
      %v1441 = vmul.f32 %v1317, 3.8221624e-06
      %v1442 = vmul.f32 %v1319, 3.8221624e-06
      %v1443 = vmul.f32 %v1321, 3.8221624e-06
      %v1444 = vmul.f32 %v1323, 3.8221624e-06
      %v1445 = vmul.f32 %v1325, 3.8221624e-06
      %v1446 = vmul.f32 %v1327, 3.8221624e-06
      %v1447 = vmul.f32 %v1329, 3.8221624e-06
      %v1448 = vmul.f32 %v1331, 3.8221624e-06
      %v1449 = vmul.f32 %v1333, 3.8221624e-06
      %v1450 = vmul.f32 %v1335, 3.8221624e-06
      %v1451 = vmul.f32 %v1337, 3.8221624e-06
      %v1452 = vmul.f32 %v1339, 3.8221624e-06
      %v1453 = vmul.f32 %v1341, 3.8221624e-06
      %v1454 = vmul.f32 %v1343, 3.8221624e-06
      %v1455 = vmul.f32 %v1345, 3.8221624e-06
      %v1456 = vmul.f32 %v1347, 3.8221624e-06
      %v1457 = vmul.f32 %v1349, 3.8221624e-06
      %v1458 = vmul.f32 %v1351, 3.8221624e-06
      %v1459 = vmul.f32 %v1353, 3.8221624e-06
      %v1460 = vmul.f32 %v1355, 3.8221624e-06
      %v1461 = vmul.f32 %v1357, 3.8221624e-06
      %v1462 = vmul.f32 %v1359, 3.8221624e-06
      %v1463 = vmul.f32 %v1361, 3.8221624e-06
      %v1464 = vmul.f32 %v1363, 3.8221624e-06
      %v1465 = vmul.f32 %v1365, 3.8221624e-06
      %v1466 = vmul.f32 %v1367, 3.8221624e-06
      %v1467 = vmul.f32 %v1369, 3.8221624e-06
      %v1468 = vmul.f32 %v1371, 3.8221624e-06
      %v1469 = vmul.f32 %v1373, 3.8221624e-06
      %v1470 = vmul.f32 %v1375, 3.8221624e-06
      %v1471 = vmul.f32 %v1377, 3.8221624e-06
      %v1472 = vmul.f32 %v1379, 3.8221624e-06
      %v1473 = vmul.f32 %v1381, 3.8221624e-06
      %v1474 = vmul.f32 %v1383, 3.8221624e-06
      %v1475 = vmul.f32 %v1385, 3.8221624e-06
      %v1476 = vmul.f32 %v1387, 3.8221624e-06
      %v1477 = vmul.f32 %v1389, 3.8221624e-06
      %v1478 = vmul.f32 %v1391, 3.8221624e-06
      %v1479 = vmul.f32 %v1393, 3.8221624e-06
      %v1480 = vmul.f32 %v1395, 3.8221624e-06
      %v1481 = vmul.f32 %v1397, 3.8221624e-06
      %v1482 = vmul.f32 %v1399, 3.8221624e-06
      %v1483 = vmul.f32 %v1401, 3.8221624e-06
      %v1484 = vmul.f32 %v1403, 3.8221624e-06
      %v1485 = vmul.f32 %v1405, 3.8221624e-06
      %v1486 = vmul.f32 %v1407, 3.8221624e-06
      %v1487 = vmul.f32 %v1409, 3.8221624e-06
      %v1488 = vmul.f32 %v1411, 3.8221624e-06
      %v1489 = vmul.f32 %v1413, 3.8221624e-06
      %v1490 = vmul.f32 %v1415, 3.8221624e-06
      %v1491 = vmul.f32 %v1417, 3.8221624e-06
      %v1492 = vmul.f32 %v1419, 3.8221624e-06
      %v1493 = vmul.f32 %v1421, 3.8221624e-06
      %v1494 = vmul.f32 %v1423, 3.8221624e-06
      %v1495 = vmul.f32 %v1425, 3.8221624e-06
      %v1496 = vmul.f32 %v1427, 3.8221624e-06
      %v1497 = vmul.f32 %v1429, 3.8221624e-06
      %v1498 = vmul.f32 %v1431, 3.8221624e-06
      %v1499 = vmul.f32 %v1433, 3.8221624e-06
      %v1500 = vmul.f32 %v1435, 3.8221624e-06
      %v1501 = vmul.f32 %v1437, 3.8221624e-06
      %v1502 = vadd.f32 %v1118, %v1438
      %v1503 = vadd.f32 %v1119, %v1439
      %v1504 = vadd.f32 %v1120, %v1440
      %v1505 = vadd.f32 %v1121, %v1441
      %v1506 = vadd.f32 %v1122, %v1442
      %v1507 = vadd.f32 %v1123, %v1443
      %v1508 = vadd.f32 %v1124, %v1444
      %v1509 = vadd.f32 %v1125, %v1445
      %v1510 = vadd.f32 %v1126, %v1446
      %v1511 = vadd.f32 %v1127, %v1447
      %v1512 = vadd.f32 %v1128, %v1448
      %v1513 = vadd.f32 %v1129, %v1449
      %v1514 = vadd.f32 %v1130, %v1450
      %v1515 = vadd.f32 %v1131, %v1451
      %v1516 = vadd.f32 %v1132, %v1452
      %v1517 = vadd.f32 %v1133, %v1453
      %v1518 = vadd.f32 %v1134, %v1454
      %v1519 = vadd.f32 %v1135, %v1455
      %v1520 = vadd.f32 %v1136, %v1456
      %v1521 = vadd.f32 %v1137, %v1457
      %v1522 = vadd.f32 %v1138, %v1458
      %v1523 = vadd.f32 %v1139, %v1459
      %v1524 = vadd.f32 %v1140, %v1460
      %v1525 = vadd.f32 %v1141, %v1461
      %v1526 = vadd.f32 %v1142, %v1462
      %v1527 = vadd.f32 %v1143, %v1463
      %v1528 = vadd.f32 %v1144, %v1464
      %v1529 = vadd.f32 %v1145, %v1465
      %v1530 = vadd.f32 %v1146, %v1466
      %v1531 = vadd.f32 %v1147, %v1467
      %v1532 = vadd.f32 %v1148, %v1468
      %v1533 = vadd.f32 %v1149, %v1469
      %v1534 = vadd.f32 %v1150, %v1470
      %v1535 = vadd.f32 %v1151, %v1471
      %v1536 = vadd.f32 %v1152, %v1472
      %v1537 = vadd.f32 %v1153, %v1473
      %v1538 = vadd.f32 %v1154, %v1474
      %v1539 = vadd.f32 %v1155, %v1475
      %v1540 = vadd.f32 %v1156, %v1476
      %v1541 = vadd.f32 %v1157, %v1477
      %v1542 = vadd.f32 %v1158, %v1478
      %v1543 = vadd.f32 %v1159, %v1479
      %v1544 = vadd.f32 %v1160, %v1480
      %v1545 = vadd.f32 %v1161, %v1481
      %v1546 = vadd.f32 %v1162, %v1482
      %v1547 = vadd.f32 %v1163, %v1483
      %v1548 = vadd.f32 %v1164, %v1484
      %v1549 = vadd.f32 %v1165, %v1485
      %v1550 = vadd.f32 %v1166, %v1486
      %v1551 = vadd.f32 %v1167, %v1487
      %v1552 = vadd.f32 %v1168, %v1488
      %v1553 = vadd.f32 %v1169, %v1489
      %v1554 = vadd.f32 %v1170, %v1490
      %v1555 = vadd.f32 %v1171, %v1491
      %v1556 = vadd.f32 %v1172, %v1492
      %v1557 = vadd.f32 %v1173, %v1493
      %v1558 = vadd.f32 %v1174, %v1494
      %v1559 = vadd.f32 %v1175, %v1495
      %v1560 = vadd.f32 %v1176, %v1496
      %v1561 = vadd.f32 %v1177, %v1497
      %v1562 = vadd.f32 %v1178, %v1498
      %v1563 = vadd.f32 %v1179, %v1499
      %v1564 = vadd.f32 %v1180, %v1500
      %v1565 = vadd.f32 %v1181, %v1501
      %v1566 = vmul.f32 %v798, %v1502
      %v1567 = vmul.f32 %v799, %v1503
      %v1568 = vmul.f32 %v800, %v1504
      %v1569 = vmul.f32 %v801, %v1505
      %v1570 = vmul.f32 %v802, %v1506
      %v1571 = vmul.f32 %v803, %v1507
      %v1572 = vmul.f32 %v804, %v1508
      %v1573 = vmul.f32 %v805, %v1509
      %v1574 = vmul.f32 %v806, %v1510
      %v1575 = vmul.f32 %v807, %v1511
      %v1576 = vmul.f32 %v808, %v1512
      %v1577 = vmul.f32 %v809, %v1513
      %v1578 = vmul.f32 %v810, %v1514
      %v1579 = vmul.f32 %v811, %v1515
      %v1580 = vmul.f32 %v812, %v1516
      %v1581 = vmul.f32 %v813, %v1517
      %v1582 = vmul.f32 %v814, %v1518
      %v1583 = vmul.f32 %v815, %v1519
      %v1584 = vmul.f32 %v816, %v1520
      %v1585 = vmul.f32 %v817, %v1521
      %v1586 = vmul.f32 %v818, %v1522
      %v1587 = vmul.f32 %v819, %v1523
      %v1588 = vmul.f32 %v820, %v1524
      %v1589 = vmul.f32 %v821, %v1525
      %v1590 = vmul.f32 %v822, %v1526
      %v1591 = vmul.f32 %v823, %v1527
      %v1592 = vmul.f32 %v824, %v1528
      %v1593 = vmul.f32 %v825, %v1529
      %v1594 = vmul.f32 %v826, %v1530
      %v1595 = vmul.f32 %v827, %v1531
      %v1596 = vmul.f32 %v828, %v1532
      %v1597 = vmul.f32 %v829, %v1533
      %v1598 = vmul.f32 %v830, %v1534
      %v1599 = vmul.f32 %v831, %v1535
      %v1600 = vmul.f32 %v832, %v1536
      %v1601 = vmul.f32 %v833, %v1537
      %v1602 = vmul.f32 %v834, %v1538
      %v1603 = vmul.f32 %v835, %v1539
      %v1604 = vmul.f32 %v836, %v1540
      %v1605 = vmul.f32 %v837, %v1541
      %v1606 = vmul.f32 %v838, %v1542
      %v1607 = vmul.f32 %v839, %v1543
      %v1608 = vmul.f32 %v840, %v1544
      %v1609 = vmul.f32 %v841, %v1545
      %v1610 = vmul.f32 %v842, %v1546
      %v1611 = vmul.f32 %v843, %v1547
      %v1612 = vmul.f32 %v844, %v1548
      %v1613 = vmul.f32 %v845, %v1549
      %v1614 = vmul.f32 %v846, %v1550
      %v1615 = vmul.f32 %v847, %v1551
      %v1616 = vmul.f32 %v848, %v1552
      %v1617 = vmul.f32 %v849, %v1553
      %v1618 = vmul.f32 %v850, %v1554
      %v1619 = vmul.f32 %v851, %v1555
      %v1620 = vmul.f32 %v852, %v1556
      %v1621 = vmul.f32 %v853, %v1557
      %v1622 = vmul.f32 %v854, %v1558
      %v1623 = vmul.f32 %v855, %v1559
      %v1624 = vmul.f32 %v856, %v1560
      %v1625 = vmul.f32 %v857, %v1561
      %v1626 = vmul.f32 %v858, %v1562
      %v1627 = vmul.f32 %v859, %v1563
      %v1628 = vmul.f32 %v860, %v1564
      %v1629 = vmul.f32 %v861, %v1565
      %v1630 = vadd.f32 %v1566, %v1567
      %v1631 = vadd.f32 %v1630, %v1568
      %v1632 = vadd.f32 %v1631, %v1569
      %v1633 = vadd.f32 %v1632, %v1570
      %v1634 = vadd.f32 %v1633, %v1571
      %v1635 = vadd.f32 %v1634, %v1572
      %v1636 = vadd.f32 %v1635, %v1573
      %v1637 = vadd.f32 %v1636, %v1574
      %v1638 = vadd.f32 %v1637, %v1575
      %v1639 = vadd.f32 %v1638, %v1576
      %v1640 = vadd.f32 %v1639, %v1577
      %v1641 = vadd.f32 %v1640, %v1578
      %v1642 = vadd.f32 %v1641, %v1579
      %v1643 = vadd.f32 %v1642, %v1580
      %v1644 = vadd.f32 %v1643, %v1581
      %v1645 = vadd.f32 %v1644, %v1582
      %v1646 = vadd.f32 %v1645, %v1583
      %v1647 = vadd.f32 %v1646, %v1584
      %v1648 = vadd.f32 %v1647, %v1585
      %v1649 = vadd.f32 %v1648, %v1586
      %v1650 = vadd.f32 %v1649, %v1587
      %v1651 = vadd.f32 %v1650, %v1588
      %v1652 = vadd.f32 %v1651, %v1589
      %v1653 = vadd.f32 %v1652, %v1590
      %v1654 = vadd.f32 %v1653, %v1591
      %v1655 = vadd.f32 %v1654, %v1592
      %v1656 = vadd.f32 %v1655, %v1593
      %v1657 = vadd.f32 %v1656, %v1594
      %v1658 = vadd.f32 %v1657, %v1595
      %v1659 = vadd.f32 %v1658, %v1596
      %v1660 = vadd.f32 %v1659, %v1597
      %v1661 = vadd.f32 %v1660, %v1598
      %v1662 = vadd.f32 %v1661, %v1599
      %v1663 = vadd.f32 %v1662, %v1600
      %v1664 = vadd.f32 %v1663, %v1601
      %v1665 = vadd.f32 %v1664, %v1602
      %v1666 = vadd.f32 %v1665, %v1603
      %v1667 = vadd.f32 %v1666, %v1604
      %v1668 = vadd.f32 %v1667, %v1605
      %v1669 = vadd.f32 %v1668, %v1606
      %v1670 = vadd.f32 %v1669, %v1607
      %v1671 = vadd.f32 %v1670, %v1608
      %v1672 = vadd.f32 %v1671, %v1609
      %v1673 = vadd.f32 %v1672, %v1610
      %v1674 = vadd.f32 %v1673, %v1611
      %v1675 = vadd.f32 %v1674, %v1612
      %v1676 = vadd.f32 %v1675, %v1613
      %v1677 = vadd.f32 %v1676, %v1614
      %v1678 = vadd.f32 %v1677, %v1615
      %v1679 = vadd.f32 %v1678, %v1616
      %v1680 = vadd.f32 %v1679, %v1617
      %v1681 = vadd.f32 %v1680, %v1618
      %v1682 = vadd.f32 %v1681, %v1619
      %v1683 = vadd.f32 %v1682, %v1620
      %v1684 = vadd.f32 %v1683, %v1621
      %v1685 = vadd.f32 %v1684, %v1622
      %v1686 = vadd.f32 %v1685, %v1623
      %v1687 = vadd.f32 %v1686, %v1624
      %v1688 = vadd.f32 %v1687, %v1625
      %v1689 = vadd.f32 %v1688, %v1626
      %v1690 = vadd.f32 %v1689, %v1627
      %v1691 = vadd.f32 %v1690, %v1628
      %v1692 = vadd.f32 %v1691, %v1629
      %1693 = vadd.xlane.f32.xlu0 %v1692
      %v1694 = vpop.xlane.xlu0 %1693
      %v1695 = vrot.slane %v1694, 4
      %v1696 = vadd.f32 %v1694, %v1695
      %v1697 = vrot.slane %v1696, 2
      %v1698 = vadd.f32 %v1696, %v1697
      %v1699 = vrot.slane %v1698, 1
      %v1700 = vadd.f32 %v1698, %v1699
      %s1701 = vtos %v1700
      %v1702 = vstv %s1701
      %1703 = vst [vmem:[%s275] sm:$0x1] %v1702
      %p1704 = scmp.lt.s32.totalorder %s17, 3
      %s1705 = scalar_select %p1704, %s17, 3
      %s1706 = scalar_lea.vmem %s5, %s1705
      // Predicated region
      $region37: #{huber_l1.1} parent=35 // pred_check
        %p1707 = pneg %p139
      $region38: #{huber_l1.1} parent=35 // pred_check_branch
        %1709 = sbr.rel (%p1707) target = $region40
      $region39: #{huber_l1.1} parent=35 // pred_region
        _
      $region40: #{huber_l1.1} parent=35 // pred_fallthru
        _
    $region36: #{huber_l1.1} parent=5 // pred_fallthru
      _
    %p1710 = scmp.le.s32.totalorder 2, %s12
    // Predicated region
    $region41: #{huber_l1.1} parent=5 // pred_check
      %p1711 = pneg %p1710
    $region42: #{huber_l1.1} parent=5 // pred_check_branch
      %1713 = sbr.rel (%p1711) target = $region44
    $region43: #{huber_l1.1} parent=5 // pred_region
      %s1714 = ssub.s32 %s12, 2
      // Predicated region
      $region45: #{huber_l1.1} parent=43 // pred_check
        %p1715 = pneg %p145
      $region46: #{huber_l1.1} parent=43 // pred_check_branch
        %1717 = sbr.rel (%p1715) target = $region48
      $region47: #{huber_l1.1} parent=43 // pred_region
        %p1718 = scmp.lt.s32.totalorder %s18, 3
        %s1719 = scalar_select %p1718, %s18, 3
        %s1720 = scalar_lea.vmem %s5, %s1719
      $region48: #{huber_l1.1} parent=43 // pred_fallthru
        _
    $region44: #{huber_l1.1} parent=5 // pred_fallthru
      _
  $region6: #{huber_l1.1} parent=0 // loop_footer
    %s16 = sadd.s32 1, %s12
  $region7: #{huber_l1.1} parent=0 // loop_footer_branch
    %11 = sbr.rel target = $region3
  $region8: #{huber_l1.1} parent=0 // loop_exit
    _

</llo_original>
